<compile_context>
chip_gen: v5e
topology: v5e:2x2
jax: 0.10.0
libtpu: 0.0.40
codegen_flags: <defaults>
</compile_context>

<pallas_src>
import jax
import jax.numpy as jnp
from jax import lax
from jax.experimental import pallas as pl
from jax.experimental.pallas import tpu as pltpu


def _psn_kernel(xyz_ref, feat_ref,
                w1_ref, s1_ref, b1_ref,
                w2_ref, s2_ref, b2_ref,
                wout_ref, bout_ref,
                gxyz_ref, gfeat_ref, idx_ref,
                xf_s, prob_s):
    k = pl.program_id(1)
    n, npoint = prob_s.shape
    c_in = feat_ref.shape[1]

    # ---- Phase 1 (once per batch element, k == 0): MLP -> sigmoid probs, and
    # stage the fused [3+C, N] gather source in VMEM scratch. ----
    @pl.when(k == 0)
    def _():
        x = xyz_ref[0]                       # [3, N]  (xyz transposed, channel-major)
        f = feat_ref[0]                      # [C, N]
        xf_s[pl.ds(0, 3), :] = x
        xf_s[pl.ds(3, c_in), :] = f
        h = jnp.dot(w1_ref[...], x, preferred_element_type=jnp.float32)   # [h1, N]
        h = jnp.maximum(h * s1_ref[...] + b1_ref[...], 0.0)
        h = jnp.dot(w2_ref[...], h, preferred_element_type=jnp.float32)   # [h2, N]
        h = jnp.maximum(h * s2_ref[...] + b2_ref[...], 0.0)
        # Final layer produced directly in [N, npoint] orientation (points on
        # sublanes) so each per-k reduction yields a lane-dense [1, npoint] row.
        logits_t = lax.dot_general(h, wout_ref[...], (((0,), (1,)), ((), ())),
                                   preferred_element_type=jnp.float32)    # [N, npoint]
        prob_s[...] = jax.nn.sigmoid(logits_t + bout_ref[...])

    # ---- Phase 2 (every grid step): exact top-1 of the remaining probs per
    # point row (max value, ties -> smallest index == torch.topk / lax.top_k),
    # fused one-hot MXU gather of xyz+features, then mask the selection. ----
    work = prob_s[...]                                                    # [N, npoint]
    iota_n = lax.broadcasted_iota(jnp.int32, (n, npoint), 0)
    m = jnp.max(work, axis=0, keepdims=True)                              # [1, npoint]
    sel = jnp.min(jnp.where(work == m, iota_n, n), axis=0, keepdims=True)  # [1, npoint] i32
    idx_ref[0, pl.ds(k, 1), :] = sel                                      # lane-dense row

    eq = iota_n == sel                                                    # [N, npoint]
    onehot = eq.astype(jnp.float32)
    slab = lax.dot_general(xf_s[...], onehot, (((1,), (0,)), ((), ())),
                           preferred_element_type=jnp.float32)            # [3+C, npoint]
    gxyz_ref[0] = slab[:3, :]
    gfeat_ref[0] = slab[3:, :]
    prob_s[...] = jnp.where(eq, -1.0, work)    # probs are in (0,1): -1 masks safely


def point_structuring_net(xyz, features, params, *, npoint, nsample):
    """xyz: [B, N, 3] f32; features: [B, C, N] f32.  Best with npoint % 128 == 0."""
    B, N, _ = xyz.shape
    C = features.shape[1]
    w1, s1, b1, w2, s2, b2, wout, bout = params      # bout: [1, npoint]
    h1 = w1.shape[0]
    h2 = w2.shape[0]
    M = nsample * npoint
    ch = 3 + C

    xyz_t = jnp.transpose(xyz, (0, 2, 1))            # [B, 3, N]

    # Explicit scoped-VMEM budget from the actual working set (review item 7).
    bpf = 4
    est = bpf * (
        2 * (3 * N + C * N)                                              # input blocks (2x)
        + (h1 * 3 + 2 * h1 + h2 * h1 + 2 * h2 + npoint * h2 + npoint)    # weights
        + 2 * (3 * npoint + C * npoint + nsample * npoint)               # output blocks (2x)
        + ch * N + N * npoint                                            # scratch
        + 4 * N * npoint + 2 * ch * npoint + h2 * N                      # transient values
    )
    vmem_limit = int(min(max(2 * est, 32 * 1024 * 1024), 56 * 1024 * 1024))

    grid_spec = pltpu.PrefetchScalarGridSpec(
        num_scalar_prefetch=0,
        grid=(B, nsample),
        in_specs=[
            pl.BlockSpec((1, 3, N), lambda b, k: (b, 0, 0)),   # fetched once per b
            pl.BlockSpec((1, C, N), lambda b, k: (b, 0, 0)),   # fetched once per b
            pl.BlockSpec((h1, 3), lambda b, k: (0, 0)),
            pl.BlockSpec((h1, 1), lambda b, k: (0, 0)),
            pl.BlockSpec((h1, 1), lambda b, k: (0, 0)),
            pl.BlockSpec((h2, h1), lambda b, k: (0, 0)),
            pl.BlockSpec((h2, 1), lambda b, k: (0, 0)),
            pl.BlockSpec((h2, 1), lambda b, k: (0, 0)),
            pl.BlockSpec((npoint, h2), lambda b, k: (0, 0)),
            pl.BlockSpec((1, npoint), lambda b, k: (0, 0)),
        ],
        out_specs=[
            pl.BlockSpec((1, 3, npoint), lambda b, k: (b, 0, k)),       # k-major flat
            pl.BlockSpec((1, C, npoint), lambda b, k: (b, 0, k)),       # k-major flat
            pl.BlockSpec((1, nsample, npoint), lambda b, k: (b, 0, 0)),  # resident per b
        ],
        scratch_shapes=[
            pltpu.VMEM((ch, N), jnp.float32),       # fused [xyz; feat] gather source
            pltpu.VMEM((N, npoint), jnp.float32),   # working probabilities
        ],
    )
    out_shapes = (
        jax.ShapeDtypeStruct((B, 3, M), jnp.float32),
        jax.ShapeDtypeStruct((B, C, M), jnp.float32),
        jax.ShapeDtypeStruct((B, nsample, npoint), jnp.int32),
    )
    gxyz_flat, gfeat_flat, idx_t = pl.pallas_call(
        _psn_kernel,
        grid_spec=grid_spec,
        out_shape=out_shapes,
        compiler_params=pltpu.CompilerParams(
            dimension_semantics=("parallel", "arbitrary"),
            vmem_limit_bytes=vmem_limit,
        ),
    )(xyz_t, features, w1, s1, b1, w2, s2, b2, wout, bout)

    # Glue: k-major flat -> PyTorch layout [B, C, npoint, nsample].
    # (Kept outside the kernel: doing it in-kernel needs a sublane->lane merge
    # relayout / strided lane stores; this transpose is minor vs. the gather matmul.)
    grouped_xyz = gxyz_flat.reshape(B, 3, nsample, npoint).transpose(0, 1, 3, 2)
    grouped_feat = gfeat_flat.reshape(B, C, nsample, npoint).transpose(0, 1, 3, 2)
    idx = jnp.transpose(idx_t, (0, 2, 1))            # [B, npoint, nsample]
    return grouped_xyz, grouped_feat, idx


def _fold_bn(gamma, beta, mean, var, eps=1e-5):
    scale = gamma / jnp.sqrt(var + eps)
    shift = beta - mean * scale
    return scale[:, None].astype(jnp.float32), shift[:, None].astype(jnp.float32)


def _reference(xyz, features, params, *, npoint, nsample):
    """Pure-JAX reference (eval-mode BN folded, same math as the kernel)."""
    w1, s1, b1, w2, s2, b2, wout, bout = params
    xyz_t = jnp.transpose(xyz, (0, 2, 1))
    hp = lax.Precision.HIGHEST
    h = jnp.einsum("oi,bin->bon", w1, xyz_t, precision=hp)
    h = jnp.maximum(h * s1[None] + b1[None], 0.0)
    h = jnp.einsum("oi,bin->bon", w2, h, precision=hp)
    h = jnp.maximum(h * s2[None] + b2[None], 0.0)
    logits = jnp.einsum("oi,bin->bon", wout, h, precision=hp) + bout.reshape(-1)[None, :, None]
    prob = jax.nn.sigmoid(logits)                            # [B, npoint, N]
    _, idx = lax.top_k(prob, nsample)                        # [B, npoint, nsample]
    gather = jax.vmap(lambda f, i: f[:, i])                  # [C,N],[P,S] -> [C,P,S]
    return gather(xyz_t, idx), gather(features, idx), idx.astype(jnp.int32), prob


if __name__ == "__main__":
    # Small but lane/sublane-aligned shapes (npoint % 128 == 0, nsample % 8 == 0).
    B, N, C = 2, 256, 4
    npoint, nsample = 128, 8
    h1, h2 = 16, 32          # mlps = [16, 32]

    key = jax.random.PRNGKey(0)
    ks = jax.random.split(key, 16)
    xyz = jax.random.normal(ks[0], (B, N, 3), jnp.float32)
    features = jax.random.normal(ks[1], (B, C, N), jnp.float32)

    # Deterministic synthetic parameters (Conv1d weights [out,in], BN eval stats).
    w1 = jax.random.normal(ks[2], (h1, 3), jnp.float32) * 0.5
    w2 = jax.random.normal(ks[3], (h2, h1), jnp.float32) * 0.3
    wout = jax.random.normal(ks[4], (npoint, h2), jnp.float32) * 0.3
    bout_vec = jax.random.normal(ks[5], (npoint,), jnp.float32) * 0.1

    g1 = jax.random.uniform(ks[6], (h1,), minval=0.5, maxval=1.5)
    be1 = jax.random.normal(ks[7], (h1,)) * 0.1
    m1 = jax.random.normal(ks[8], (h1,)) * 0.1
    v1 = jax.random.uniform(ks[9], (h1,), minval=0.5, maxval=1.5)
    g2 = jax.random.uniform(ks[10], (h2,), minval=0.5, maxval=1.5)
    be2 = jax.random.normal(ks[11], (h2,)) * 0.1
    m2 = jax.random.normal(ks[12], (h2,)) * 0.1
    v2 = jax.random.uniform(ks[13], (h2,), minval=0.5, maxval=1.5)

    s1, b1 = _fold_bn(g1, be1, m1, v1)
    s2, b2 = _fold_bn(g2, be2, m2, v2)
    params = (w1, s1, b1, w2, s2, b2, wout, bout_vec[None, :].astype(jnp.float32))

    grouped_xyz, grouped_feat, idx = point_structuring_net(
        xyz, features, params, npoint=npoint, nsample=nsample)
    jax.block_until_ready((grouped_xyz, grouped_feat, idx))

    ref_gxyz, ref_gfeat, ref_idx, ref_prob = _reference(
        xyz, features, params, npoint=npoint, nsample=nsample)

    # Shape / dtype checks.
    assert grouped_xyz.shape == (B, 3, npoint, nsample)
    assert grouped_feat.shape == (B, C, npoint, nsample)
    assert idx.shape == (B, npoint, nsample) and idx.dtype == jnp.int32
    assert bool(jnp.all((idx >= 0) & (idx < N)))

    # Self-consistency: the in-kernel one-hot MXU gather must reproduce a plain gather.
    gather = jax.vmap(lambda f, i: f[:, i])
    xyz_t = jnp.transpose(xyz, (0, 2, 1))
    assert bool(jnp.allclose(grouped_xyz, gather(xyz_t, idx), atol=1e-6))
    assert bool(jnp.allclose(grouped_feat, gather(features, idx), atol=1e-6))

    # Top-k correctness, value-level (robust to float near-tie index flips vs XLA):
    ref_vals = jnp.take_along_axis(ref_prob, ref_idx, axis=-1)
    ker_vals = jnp.take_along_axis(ref_prob, idx, axis=-1)
    assert bool(jnp.allclose(ker_vals, ref_vals, atol=1e-5, rtol=1e-5))
    assert bool(jnp.all(ker_vals[..., :-1] >= ker_vals[..., 1:] - 1e-6))  # descending
    assert float(jnp.mean((idx == ref_idx).astype(jnp.float32))) > 0.99

    print("KERNEL_OK")
</pallas_src>

<mosaic_0001>
module attributes {stable_mosaic.version = 11 : i64} {
  func.func @_psn_kernel(%arg0: i32, %arg1: i32, %arg2: memref<1x3x256xf32, #tpu.memory_space<vmem>>, %arg3: memref<1x4x256xf32, #tpu.memory_space<vmem>>, %arg4: memref<16x3xf32, #tpu.memory_space<vmem>>, %arg5: memref<16x1xf32, #tpu.memory_space<vmem>>, %arg6: memref<16x1xf32, #tpu.memory_space<vmem>>, %arg7: memref<32x16xf32, #tpu.memory_space<vmem>>, %arg8: memref<32x1xf32, #tpu.memory_space<vmem>>, %arg9: memref<32x1xf32, #tpu.memory_space<vmem>>, %arg10: memref<128x32xf32, #tpu.memory_space<vmem>>, %arg11: memref<1x128xf32, #tpu.memory_space<vmem>>, %arg12: memref<1x3x128xf32, #tpu.memory_space<vmem>>, %arg13: memref<1x4x128xf32, #tpu.memory_space<vmem>>, %arg14: memref<1x8x128xi32, #tpu.memory_space<vmem>>, %arg15: memref<7x256xf32, #tpu.memory_space<vmem>>, %arg16: memref<256x128xf32, #tpu.memory_space<vmem>>) attributes {dimension_semantics = [#tpu.dimension_semantics<parallel>, #tpu.dimension_semantics<arbitrary>], iteration_bounds = array<i64: 2, 8>, scalar_prefetch = 0 : i64, scratch_operands = 2 : i64, tpu.core_type = #tpu.core_type<tc>, window_params = [{transform_indices = @transform_0, window_bounds = array<i64: 1, 3, 256>}, {transform_indices = @transform_1, window_bounds = array<i64: 1, 4, 256>}, {pipeline_mode = #tpu.pipeline_mode<synchronous>, transform_indices = @transform_2, window_bounds = array<i64: 16, 3>}, {pipeline_mode = #tpu.pipeline_mode<synchronous>, transform_indices = @transform_3, window_bounds = array<i64: 16, 1>}, {pipeline_mode = #tpu.pipeline_mode<synchronous>, transform_indices = @transform_4, window_bounds = array<i64: 16, 1>}, {pipeline_mode = #tpu.pipeline_mode<synchronous>, transform_indices = @transform_5, window_bounds = array<i64: 32, 16>}, {pipeline_mode = #tpu.pipeline_mode<synchronous>, transform_indices = @transform_6, window_bounds = array<i64: 32, 1>}, {pipeline_mode = #tpu.pipeline_mode<synchronous>, transform_indices = @transform_7, window_bounds = array<i64: 32, 1>}, {pipeline_mode = #tpu.pipeline_mode<synchronous>, transform_indices = @transform_8, window_bounds = array<i64: 128, 32>}, {pipeline_mode = #tpu.pipeline_mode<synchronous>, transform_indices = @transform_9, window_bounds = array<i64: 1, 128>}, {transform_indices = @transform_10, window_bounds = array<i64: 1, 3, 128>}, {transform_indices = @transform_11, window_bounds = array<i64: 1, 4, 128>}, {transform_indices = @transform_12, window_bounds = array<i64: 1, 8, 128>}]} {
    %c0_i32 = arith.constant 0 : i32
    %0 = arith.cmpi eq, %arg1, %c0_i32 : i32
    %1 = arith.extui %0 : i1 to i32
    %c0_i32_0 = arith.constant 0 : i32
    %2 = arith.cmpi ne, %1, %c0_i32_0 : i32
    scf.if %2 {
      %c0_17 = arith.constant 0 : index
      %c0_18 = arith.constant 0 : index
      %c0_19 = arith.constant 0 : index
      %34 = vector.load %arg2[%c0_17, %c0_18, %c0_19] : memref<1x3x256xf32, #tpu.memory_space<vmem>>, vector<1x3x256xf32>
      %35 = vector.shape_cast %34 : vector<1x3x256xf32> to vector<3x256xf32>
      %c0_20 = arith.constant 0 : index
      %c0_21 = arith.constant 0 : index
      %c0_22 = arith.constant 0 : index
      %36 = vector.load %arg3[%c0_20, %c0_21, %c0_22] : memref<1x4x256xf32, #tpu.memory_space<vmem>>, vector<1x4x256xf32>
      %37 = vector.shape_cast %36 : vector<1x4x256xf32> to vector<4x256xf32>
      %c0_23 = arith.constant 0 : index
      %c0_24 = arith.constant 0 : index
      %38 = vector.load %arg15[%c0_23, %c0_24] : memref<7x256xf32, #tpu.memory_space<vmem>>, vector<3x256xf32>
      tpu.vector_store %arg15[%c0_23, %c0_24], %35 {strides = array<i32>} : memref<7x256xf32, #tpu.memory_space<vmem>>, vector<3x256xf32>,
      %c3 = arith.constant 3 : index
      %c0_25 = arith.constant 0 : index
      %39 = vector.load %arg15[%c3, %c0_25] : memref<7x256xf32, #tpu.memory_space<vmem>>, vector<4x256xf32>
      tpu.vector_store %arg15[%c3, %c0_25], %37 {strides = array<i32>} : memref<7x256xf32, #tpu.memory_space<vmem>>, vector<4x256xf32>,
      %c0_26 = arith.constant 0 : index
      %c0_27 = arith.constant 0 : index
      %40 = vector.load %arg4[%c0_26, %c0_27] : memref<16x3xf32, #tpu.memory_space<vmem>>, vector<16x3xf32>
      %cst_28 = arith.constant dense<0.000000e+00> : vector<16x256xf32>
      %41 = tpu.matmul %40, %35, %cst_28 {dimension_numbers = #tpu.dot_dimension_numbers<[1], [0], [0], [1], [0, 0, 1, 1], [], []>} : vector<16x3xf32>, vector<3x256xf32>, vector<16x256xf32> -> vector<16x256xf32>
      %c0_29 = arith.constant 0 : index
      %c0_30 = arith.constant 0 : index
      %42 = vector.load %arg5[%c0_29, %c0_30] : memref<16x1xf32, #tpu.memory_space<vmem>>, vector<16x1xf32>
      %43 = vector.broadcast %42 : vector<16x1xf32> to vector<16x256xf32>
      %44 = arith.mulf %41, %43 : vector<16x256xf32>
      %c0_31 = arith.constant 0 : index
      %c0_32 = arith.constant 0 : index
      %45 = vector.load %arg6[%c0_31, %c0_32] : memref<16x1xf32, #tpu.memory_space<vmem>>, vector<16x1xf32>
      %46 = vector.broadcast %45 : vector<16x1xf32> to vector<16x256xf32>
      %47 = arith.addf %44, %46 : vector<16x256xf32>
      %cst_33 = arith.constant 0.000000e+00 : f32
      %48 = vector.broadcast %cst_33 : f32 to vector<16x256xf32>
      %49 = arith.maximumf %47, %48 : vector<16x256xf32>
      %c0_34 = arith.constant 0 : index
      %c0_35 = arith.constant 0 : index
      %50 = vector.load %arg7[%c0_34, %c0_35] : memref<32x16xf32, #tpu.memory_space<vmem>>, vector<32x16xf32>
      %cst_36 = arith.constant dense<0.000000e+00> : vector<32x256xf32>
      %51 = tpu.matmul %50, %49, %cst_36 {dimension_numbers = #tpu.dot_dimension_numbers<[1], [0], [0], [1], [0, 0, 1, 1], [], []>} : vector<32x16xf32>, vector<16x256xf32>, vector<32x256xf32> -> vector<32x256xf32>
      %c0_37 = arith.constant 0 : index
      %c0_38 = arith.constant 0 : index
      %52 = vector.load %arg8[%c0_37, %c0_38] : memref<32x1xf32, #tpu.memory_space<vmem>>, vector<32x1xf32>
      %53 = vector.broadcast %52 : vector<32x1xf32> to vector<32x256xf32>
      %54 = arith.mulf %51, %53 : vector<32x256xf32>
      %c0_39 = arith.constant 0 : index
      %c0_40 = arith.constant 0 : index
      %55 = vector.load %arg9[%c0_39, %c0_40] : memref<32x1xf32, #tpu.memory_space<vmem>>, vector<32x1xf32>
      %56 = vector.broadcast %55 : vector<32x1xf32> to vector<32x256xf32>
      %57 = arith.addf %54, %56 : vector<32x256xf32>
      %cst_41 = arith.constant 0.000000e+00 : f32
      %58 = vector.broadcast %cst_41 : f32 to vector<32x256xf32>
      %59 = arith.maximumf %57, %58 : vector<32x256xf32>
      %c0_42 = arith.constant 0 : index
      %c0_43 = arith.constant 0 : index
      %60 = vector.load %arg10[%c0_42, %c0_43] : memref<128x32xf32, #tpu.memory_space<vmem>>, vector<128x32xf32>
      %cst_44 = arith.constant dense<0.000000e+00> : vector<256x128xf32>
      %61 = tpu.matmul %59, %60, %cst_44 {dimension_numbers = #tpu.dot_dimension_numbers<[0], [1], [1], [0], [0, 1, 1, 0], [], []>} : vector<32x256xf32>, vector<128x32xf32>, vector<256x128xf32> -> vector<256x128xf32>
      %c0_45 = arith.constant 0 : index
      %c0_46 = arith.constant 0 : index
      %62 = vector.load %arg11[%c0_45, %c0_46] : memref<1x128xf32, #tpu.memory_space<vmem>>, vector<1x128xf32>
      %63 = vector.broadcast %62 : vector<1x128xf32> to vector<256x128xf32>
      %64 = arith.addf %61, %63 : vector<256x128xf32>
      %65 = arith.negf %64 : vector<256x128xf32>
      %66 = math.exp %65 : vector<256x128xf32>
      %cst_47 = arith.constant 1.000000e+00 : f32
      %67 = vector.broadcast %cst_47 : f32 to vector<256x128xf32>
      %68 = arith.addf %67, %66 : vector<256x128xf32>
      %69 = arith.divf %67, %68 : vector<256x128xf32>
      %c0_48 = arith.constant 0 : index
      %c0_49 = arith.constant 0 : index
      %70 = vector.load %arg16[%c0_48, %c0_49] : memref<256x128xf32, #tpu.memory_space<vmem>>, vector<256x128xf32>
      tpu.vector_store %arg16[%c0_48, %c0_49], %69 {strides = array<i32>} : memref<256x128xf32, #tpu.memory_space<vmem>>, vector<256x128xf32>,
    } else {
    }
    %c0 = arith.constant 0 : index
    %c0_1 = arith.constant 0 : index
    %3 = vector.load %arg16[%c0, %c0_1] : memref<256x128xf32, #tpu.memory_space<vmem>>, vector<256x128xf32>
    %4 = tpu.iota {dimensions = array<i32: 0>} : vector<256x128xi32>
    %cst = arith.constant dense<0xFF800000> : vector<128xf32>
    %5 = vector.multi_reduction <maximumf>, %3, %cst [0] : vector<256x128xf32> to vector<128xf32>
    %6 = vector.shape_cast %5 : vector<128xf32> to vector<1x128xf32>
    %7 = vector.broadcast %6 : vector<1x128xf32> to vector<256x128xf32>
    %8 = arith.cmpf oeq, %3, %7 : vector<256x128xf32>
    %c256_i32 = arith.constant 256 : i32
    %9 = vector.broadcast %c256_i32 : i32 to vector<256x128xi32>
    %10 = arith.select %8, %4, %9 : vector<256x128xi1>, vector<256x128xi32>
    %cst_2 = arith.constant dense<2147483647> : vector<128xi32>
    %11 = vector.multi_reduction <minsi>, %10, %cst_2 [0] : vector<256x128xi32> to vector<128xi32>
    %12 = vector.shape_cast %11 : vector<128xi32> to vector<1x128xi32>
    %c0_3 = arith.constant 0 : index
    %13 = arith.index_cast %arg1 : i32 to index
    %c0_4 = arith.constant 0 : index
    %14 = vector.load %arg14[%c0_3, %13, %c0_4] : memref<1x8x128xi32, #tpu.memory_space<vmem>>, vector<1x1x128xi32>
    %15 = vector.shape_cast %14 : vector<1x1x128xi32> to vector<1x128xi32>
    %16 = vector.shape_cast %12 : vector<1x128xi32> to vector<1x1x128xi32>
    tpu.vector_store %arg14[%c0_3, %13, %c0_4], %16 {strides = array<i32>} : memref<1x8x128xi32, #tpu.memory_space<vmem>>, vector<1x1x128xi32>,
    %17 = vector.broadcast %12 : vector<1x128xi32> to vector<256x128xi32>
    %18 = arith.cmpi eq, %4, %17 : vector<256x128xi32>
    %19 = arith.extui %18 : vector<256x128xi1> to vector<256x128xi32>
    %20 = arith.sitofp %19 : vector<256x128xi32> to vector<256x128xf32>
    %c0_5 = arith.constant 0 : index
    %c0_6 = arith.constant 0 : index
    %21 = vector.load %arg15[%c0_5, %c0_6] : memref<7x256xf32, #tpu.memory_space<vmem>>, vector<7x256xf32>
    %cst_7 = arith.constant dense<0.000000e+00> : vector<7x128xf32>
    %22 = tpu.matmul %21, %20, %cst_7 {dimension_numbers = #tpu.dot_dimension_numbers<[1], [0], [0], [1], [0, 0, 1, 1], [], []>} : vector<7x256xf32>, vector<256x128xf32>, vector<7x128xf32> -> vector<7x128xf32>
    %23 = vector.extract_strided_slice %22 {offsets = [0, 0], sizes = [3, 128], strides = [1, 1]} : vector<7x128xf32> to vector<3x128xf32>
    %c0_8 = arith.constant 0 : index
    %c0_9 = arith.constant 0 : index
    %c0_10 = arith.constant 0 : index
    %24 = vector.load %arg12[%c0_8, %c0_9, %c0_10] : memref<1x3x128xf32, #tpu.memory_space<vmem>>, vector<1x3x128xf32>
    %25 = vector.shape_cast %24 : vector<1x3x128xf32> to vector<3x128xf32>
    %26 = vector.shape_cast %23 : vector<3x128xf32> to vector<1x3x128xf32>
    tpu.vector_store %arg12[%c0_8, %c0_9, %c0_10], %26 {strides = array<i32>} : memref<1x3x128xf32, #tpu.memory_space<vmem>>, vector<1x3x128xf32>,
    %27 = vector.extract_strided_slice %22 {offsets = [3, 0], sizes = [4, 128], strides = [1, 1]} : vector<7x128xf32> to vector<4x128xf32>
    %c0_11 = arith.constant 0 : index
    %c0_12 = arith.constant 0 : index
    %c0_13 = arith.constant 0 : index
    %28 = vector.load %arg13[%c0_11, %c0_12, %c0_13] : memref<1x4x128xf32, #tpu.memory_space<vmem>>, vector<1x4x128xf32>
    %29 = vector.shape_cast %28 : vector<1x4x128xf32> to vector<4x128xf32>
    %30 = vector.shape_cast %27 : vector<4x128xf32> to vector<1x4x128xf32>
    tpu.vector_store %arg13[%c0_11, %c0_12, %c0_13], %30 {strides = array<i32>} : memref<1x4x128xf32, #tpu.memory_space<vmem>>, vector<1x4x128xf32>,
    %cst_14 = arith.constant -1.000000e+00 : f32
    %31 = vector.broadcast %cst_14 : f32 to vector<256x128xf32>
    %32 = arith.select %18, %31, %3 : vector<256x128xi1>, vector<256x128xf32>
    %c0_15 = arith.constant 0 : index
    %c0_16 = arith.constant 0 : index
    %33 = vector.load %arg16[%c0_15, %c0_16] : memref<256x128xf32, #tpu.memory_space<vmem>>, vector<256x128xf32>
    tpu.vector_store %arg16[%c0_15, %c0_16], %32 {strides = array<i32>} : memref<256x128xf32, #tpu.memory_space<vmem>>, vector<256x128xf32>,
    return
  }
  func.func @transform_0(%arg0: i32, %arg1: i32) -> (i32, i32, i32) {
    %c0_i32 = arith.constant 0 : i32
    %c0_i32_0 = arith.constant 0 : i32
    %c0_i32_1 = arith.constant 0 : i32
    return %arg0, %c0_i32, %c0_i32_0 : i32, i32, i32
  }
  func.func @transform_1(%arg0: i32, %arg1: i32) -> (i32, i32, i32) {
    %c0_i32 = arith.constant 0 : i32
    %c0_i32_0 = arith.constant 0 : i32
    %c0_i32_1 = arith.constant 0 : i32
    return %arg0, %c0_i32, %c0_i32_0 : i32, i32, i32
  }
  func.func @transform_2(%arg0: i32, %arg1: i32) -> (i32, i32) {
    %c0_i32 = arith.constant 0 : i32
    %c0_i32_0 = arith.constant 0 : i32
    %c0_i32_1 = arith.constant 0 : i32
    return %c0_i32, %c0_i32_0 : i32, i32
  }
  func.func @transform_3(%arg0: i32, %arg1: i32) -> (i32, i32) {
    %c0_i32 = arith.constant 0 : i32
    %c0_i32_0 = arith.constant 0 : i32
    %c0_i32_1 = arith.constant 0 : i32
    return %c0_i32, %c0_i32_0 : i32, i32
  }
  func.func @transform_4(%arg0: i32, %arg1: i32) -> (i32, i32) {
    %c0_i32 = arith.constant 0 : i32
    %c0_i32_0 = arith.constant 0 : i32
    %c0_i32_1 = arith.constant 0 : i32
    return %c0_i32, %c0_i32_0 : i32, i32
  }
  func.func @transform_5(%arg0: i32, %arg1: i32) -> (i32, i32) {
    %c0_i32 = arith.constant 0 : i32
    %c0_i32_0 = arith.constant 0 : i32
    %c0_i32_1 = arith.constant 0 : i32
    return %c0_i32, %c0_i32_0 : i32, i32
  }
  func.func @transform_6(%arg0: i32, %arg1: i32) -> (i32, i32) {
    %c0_i32 = arith.constant 0 : i32
    %c0_i32_0 = arith.constant 0 : i32
    %c0_i32_1 = arith.constant 0 : i32
    return %c0_i32, %c0_i32_0 : i32, i32
  }
  func.func @transform_7(%arg0: i32, %arg1: i32) -> (i32, i32) {
    %c0_i32 = arith.constant 0 : i32
    %c0_i32_0 = arith.constant 0 : i32
    %c0_i32_1 = arith.constant 0 : i32
    return %c0_i32, %c0_i32_0 : i32, i32
  }
  func.func @transform_8(%arg0: i32, %arg1: i32) -> (i32, i32) {
    %c0_i32 = arith.constant 0 : i32
    %c0_i32_0 = arith.constant 0 : i32
    %c0_i32_1 = arith.constant 0 : i32
    return %c0_i32, %c0_i32_0 : i32, i32
  }
  func.func @transform_9(%arg0: i32, %arg1: i32) -> (i32, i32) {
    %c0_i32 = arith.constant 0 : i32
    %c0_i32_0 = arith.constant 0 : i32
    %c0_i32_1 = arith.constant 0 : i32
    return %c0_i32, %c0_i32_0 : i32, i32
  }
  func.func @transform_10(%arg0: i32, %arg1: i32) -> (i32, i32, i32) {
    %c0_i32 = arith.constant 0 : i32
    %c0_i32_0 = arith.constant 0 : i32
    return %arg0, %c0_i32, %arg1 : i32, i32, i32
  }
  func.func @transform_11(%arg0: i32, %arg1: i32) -> (i32, i32, i32) {
    %c0_i32 = arith.constant 0 : i32
    %c0_i32_0 = arith.constant 0 : i32
    return %arg0, %c0_i32, %arg1 : i32, i32, i32
  }
  func.func @transform_12(%arg0: i32, %arg1: i32) -> (i32, i32, i32) {
    %c0_i32 = arith.constant 0 : i32
    %c0_i32_0 = arith.constant 0 : i32
    %c0_i32_1 = arith.constant 0 : i32
    return %arg0, %c0_i32, %c0_i32_0 : i32, i32, i32
  }
}

</mosaic_0001>

<llo_original>
// kernel: tpu_custom_call.1
$region0: #{tpu_custom_call.1}
  #allocation0 [shape = 'u32[]', space=smem, size = 0x4, offset = 0x4, fixed_abs, tag = 'smem constant byte address 0x4 - core index']
  #allocation1 [shape = 'u32[72,128]{1,0:T(1,128)}', space=vmem, size = 0x9000, scoped, tag = 'internal scratch']
  #allocation2 [shape = 'f32[7,256]{1,0:T(8,128)}', space=vmem, size = 0x2000, scoped, tag = 'scratch operand']
  #allocation3 [shape = 'f32[256,128]{1,0:T(8,128)}', space=vmem, size = 0x20000, scoped, tag = 'scratch operand']
  %s0 = inlined_call_operand.vmem [shape: f32[2,3,256], index: 0, kind: input, shape index: {}]
  %s1 = inlined_call_operand.vmem [shape: f32[2,4,256], index: 1, kind: input, shape index: {}]
  %s2 = inlined_call_operand.vmem [shape: f32[16,3], index: 2, kind: input, shape index: {}]
  %s3 = inlined_call_operand.vmem [shape: f32[16,1], index: 3, kind: input, shape index: {}]
  %s4 = inlined_call_operand.vmem [shape: f32[16,1], index: 4, kind: input, shape index: {}]
  %s5 = inlined_call_operand.vmem [shape: f32[32,16], index: 5, kind: input, shape index: {}]
  %s6 = inlined_call_operand.vmem [shape: f32[32,1], index: 6, kind: input, shape index: {}]
  %s7 = inlined_call_operand.vmem [shape: f32[32,1], index: 7, kind: input, shape index: {}]
  %s8 = inlined_call_operand.vmem [shape: f32[128,32], index: 8, kind: input, shape index: {}]
  %s9 = inlined_call_operand.vmem [shape: f32[1,128], index: 9, kind: input, shape index: {}]
  %s10 = inlined_call_operand.vmem [shape: f32[2,3,1024], index: 10, kind: output, shape index: {0}]
  %s11 = inlined_call_operand.hbm [shape: f32[2,4,1024], index: 11, kind: output, shape index: {1}]
  %s12 = inlined_call_operand.hbm [shape: s32[2,8,128], index: 12, kind: output, shape index: {2}]
  %13 = xla_tuple %s10, %s11, %s12
  %s14 = sld [smem:[#allocation0]]
  $region93: #{tpu_custom_call.1} parent=0
    _
  %s16 = ssub.s32 1, %s14
  %s17 = scalar_select 0, %s16, %s14
  $region1: #{tpu_custom_call.1} parent=0
    #allocation4 [shape = 'u8[4096]{0}', space=vmem, size = 0x1000, scoped, tag = 'output window, operand 1']
    #allocation5 [shape = 's32[2]{0}', space=sflag, size = 0x8, scoped, tag = 'scoped memory for tpu_custom_call.1']
    #allocation6 [shape = 'u8[8192]{0}', space=vmem, size = 0x2000, scoped, tag = 'output window, operand 2']
    #allocation7 [shape = 's32[2]{0}', space=sflag, size = 0x8, scoped, tag = 'scoped memory for tpu_custom_call.1']
    %18 = vsyncpa [#allocation5], 0
    %s19 = scalar_lea.sflag [#allocation5], 1
    %20 = vsyncpa %s19, 0
    %21 = vsyncpa [#allocation7], 0
    %s22 = scalar_lea.sflag [#allocation7], 1
    %23 = vsyncpa %s22, 0
    loop: start=0, step=1, limit=18
    $region2: #{tpu_custom_call.1} parent=1 // loop_pre_header
      _
    $region3: #{tpu_custom_call.1} parent=1 // loop_header
      %s25 = sphi 0, %s29
      %p26 = scmp.ge.s32.totalorder %s25, 18
      %s32 = sphi 0, %s44
      %s33 = sphi 0, %s40
      %s34 = sphi 0, %s32
      %s35 = sphi 0, %s33
      %s36 = sphi 0, %s34
      %s37 = sphi 0, %s35
      %s47 = sphi 0, %s49
      %s50 = sphi 0, %s47
      %s51 = sphi 0, %s50
      %s67 = sphi 0, %s51
      %s73 = sphi 0, %s75
      %s76 = sphi 0, %s73
      %s77 = sphi 0, %s76
      %s93 = sphi 0, %s77
      %s97 = sphi 0, %s97
      %s99 = sphi 0, %s97
      %s100 = sphi 0, %s99
      %s114 = sphi 0, %s100
      %s118 = sphi 0, %s118
      %s120 = sphi 0, %s118
      %s121 = sphi 0, %s120
      %s135 = sphi 0, %s121
      %s139 = sphi 0, %s139
      %s141 = sphi 0, %s139
      %s142 = sphi 0, %s141
      %s156 = sphi 0, %s142
      %s160 = sphi 0, %s160
      %s162 = sphi 0, %s160
      %s163 = sphi 0, %s162
      %s177 = sphi 0, %s163
      %s181 = sphi 0, %s181
      %s183 = sphi 0, %s181
      %s184 = sphi 0, %s183
      %s198 = sphi 0, %s184
      %s202 = sphi 0, %s202
      %s204 = sphi 0, %s202
      %s205 = sphi 0, %s204
      %s219 = sphi 0, %s205
      %s223 = sphi 0, %s223
      %s225 = sphi 0, %s223
      %s226 = sphi 0, %s225
      %s240 = sphi 0, %s226
      %s244 = sphi 0, %s244
      %s246 = sphi 0, %s244
      %s247 = sphi 0, %s246
      %s261 = sphi 0, %s247
      %s269 = sphi 0, %s271
      %s272 = sphi 0, %s269
      %s273 = sphi 0, %s272
      %s289 = sphi 0, %s273
      %s297 = sphi 0, %s299
      %s300 = sphi 0, %s297
      %s301 = sphi 0, %s300
      %s317 = sphi 0, %s301
      %s323 = sphi 0, %s325
      %s326 = sphi 0, %s323
      %s327 = sphi 0, %s326
      %s343 = sphi 0, %s327
    $region4: #{tpu_custom_call.1} parent=1 // loop_header_branch
      %28 = sbr.rel (%p26) target = $region8
    $region5: #{tpu_custom_call.1} parent=1 // loop_body
      %s30 = ssub.s32 %s25, 1
      %s31 = ssub.s32 %s25, 2
      %s38 = sadd.s32 1, %s33
      %p39 = scmp.ge.s32.totalorder %s38, 8
      %s40 = scalar_select %p39, 0, %s38
      %s41 = sadd.s32 1, %s32
      %s42 = scalar_select %p39, %s41, %s32
      %p43 = scmp.ge.s32.totalorder %s42, 2
      %s44 = scalar_select %p43, 0, %s42
      %s45 = ssub.s32 %s32, %s44
      %p46 = scmp.eq.s32.totalorder %s45, 0
      %s48 = sadd.s32 %s47, 1
      %s49 = scalar_select %p46, %s47, %s48
      %p52 = pneg %p46
      %p53 = scmp.eq.s32.totalorder %s25, 15
      %p54 = por %p52, %p53
      %p55 = scmp.ne.s32.totalorder %s47, %s50
      %p56 = scmp.eq.s32.totalorder %s25, 0
      %p57 = por %p55, %p56
      %p58 = scmp.ne.s32.totalorder %s47, %s50
      %p59 = scmp.eq.s32.totalorder %s30, 15
      %p60 = por %p58, %p59
      %p61 = scmp.ne.s32.totalorder %s50, %s51
      %p62 = scmp.eq.s32.totalorder %s30, 0
      %p63 = por %p61, %p62
      %p64 = scmp.ne.s32.totalorder %s50, %s51
      %p65 = scmp.eq.s32.totalorder %s31, 15
      %p66 = por %p64, %p65
      %p68 = scmp.ne.s32.totalorder %s51, %s67
      %p69 = scmp.eq.s32.totalorder %s31, 0
      %p70 = por %p68, %p69
      %s71 = ssub.s32 %s32, %s44
      %p72 = scmp.eq.s32.totalorder %s71, 0
      %s74 = sadd.s32 %s73, 1
      %s75 = scalar_select %p72, %s73, %s74
      %p78 = pneg %p72
      %p79 = scmp.eq.s32.totalorder %s25, 15
      %p80 = por %p78, %p79
      %p81 = scmp.ne.s32.totalorder %s73, %s76
      %p82 = scmp.eq.s32.totalorder %s25, 0
      %p83 = por %p81, %p82
      %p84 = scmp.ne.s32.totalorder %s73, %s76
      %p85 = scmp.eq.s32.totalorder %s30, 15
      %p86 = por %p84, %p85
      %p87 = scmp.ne.s32.totalorder %s76, %s77
      %p88 = scmp.eq.s32.totalorder %s30, 0
      %p89 = por %p87, %p88
      %p90 = scmp.ne.s32.totalorder %s76, %s77
      %p91 = scmp.eq.s32.totalorder %s31, 15
      %p92 = por %p90, %p91
      %p94 = scmp.ne.s32.totalorder %s77, %s93
      %p95 = scmp.eq.s32.totalorder %s31, 0
      %p96 = por %p94, %p95
      %s98 = sadd.s32 %s97, 1
      %p101 = scmp.eq.s32.totalorder %s25, 15
      %p102 = scmp.ne.s32.totalorder %s97, %s99
      %p103 = scmp.eq.s32.totalorder %s25, 0
      %p104 = por %p102, %p103
      %p105 = scmp.ne.s32.totalorder %s97, %s99
      %p106 = scmp.eq.s32.totalorder %s30, 15
      %p107 = por %p105, %p106
      %p108 = scmp.ne.s32.totalorder %s99, %s100
      %p109 = scmp.eq.s32.totalorder %s30, 0
      %p110 = por %p108, %p109
      %p111 = scmp.ne.s32.totalorder %s99, %s100
      %p112 = scmp.eq.s32.totalorder %s31, 15
      %p113 = por %p111, %p112
      %p115 = scmp.ne.s32.totalorder %s100, %s114
      %p116 = scmp.eq.s32.totalorder %s31, 0
      %p117 = por %p115, %p116
      %s119 = sadd.s32 %s118, 1
      %p122 = scmp.eq.s32.totalorder %s25, 15
      %p123 = scmp.ne.s32.totalorder %s118, %s120
      %p124 = scmp.eq.s32.totalorder %s25, 0
      %p125 = por %p123, %p124
      %p126 = scmp.ne.s32.totalorder %s118, %s120
      %p127 = scmp.eq.s32.totalorder %s30, 15
      %p128 = por %p126, %p127
      %p129 = scmp.ne.s32.totalorder %s120, %s121
      %p130 = scmp.eq.s32.totalorder %s30, 0
      %p131 = por %p129, %p130
      %p132 = scmp.ne.s32.totalorder %s120, %s121
      %p133 = scmp.eq.s32.totalorder %s31, 15
      %p134 = por %p132, %p133
      %p136 = scmp.ne.s32.totalorder %s121, %s135
      %p137 = scmp.eq.s32.totalorder %s31, 0
      %p138 = por %p136, %p137
      %s140 = sadd.s32 %s139, 1
      %p143 = scmp.eq.s32.totalorder %s25, 15
      %p144 = scmp.ne.s32.totalorder %s139, %s141
      %p145 = scmp.eq.s32.totalorder %s25, 0
      %p146 = por %p144, %p145
      %p147 = scmp.ne.s32.totalorder %s139, %s141
      %p148 = scmp.eq.s32.totalorder %s30, 15
      %p149 = por %p147, %p148
      %p150 = scmp.ne.s32.totalorder %s141, %s142
      %p151 = scmp.eq.s32.totalorder %s30, 0
      %p152 = por %p150, %p151
      %p153 = scmp.ne.s32.totalorder %s141, %s142
      %p154 = scmp.eq.s32.totalorder %s31, 15
      %p155 = por %p153, %p154
      %p157 = scmp.ne.s32.totalorder %s142, %s156
      %p158 = scmp.eq.s32.totalorder %s31, 0
      %p159 = por %p157, %p158
      %s161 = sadd.s32 %s160, 1
      %p164 = scmp.eq.s32.totalorder %s25, 15
      %p165 = scmp.ne.s32.totalorder %s160, %s162
      %p166 = scmp.eq.s32.totalorder %s25, 0
      %p167 = por %p165, %p166
      %p168 = scmp.ne.s32.totalorder %s160, %s162
      %p169 = scmp.eq.s32.totalorder %s30, 15
      %p170 = por %p168, %p169
      %p171 = scmp.ne.s32.totalorder %s162, %s163
      %p172 = scmp.eq.s32.totalorder %s30, 0
      %p173 = por %p171, %p172
      %p174 = scmp.ne.s32.totalorder %s162, %s163
      %p175 = scmp.eq.s32.totalorder %s31, 15
      %p176 = por %p174, %p175
      %p178 = scmp.ne.s32.totalorder %s163, %s177
      %p179 = scmp.eq.s32.totalorder %s31, 0
      %p180 = por %p178, %p179
      %s182 = sadd.s32 %s181, 1
      %p185 = scmp.eq.s32.totalorder %s25, 15
      %p186 = scmp.ne.s32.totalorder %s181, %s183
      %p187 = scmp.eq.s32.totalorder %s25, 0
      %p188 = por %p186, %p187
      %p189 = scmp.ne.s32.totalorder %s181, %s183
      %p190 = scmp.eq.s32.totalorder %s30, 15
      %p191 = por %p189, %p190
      %p192 = scmp.ne.s32.totalorder %s183, %s184
      %p193 = scmp.eq.s32.totalorder %s30, 0
      %p194 = por %p192, %p193
      %p195 = scmp.ne.s32.totalorder %s183, %s184
      %p196 = scmp.eq.s32.totalorder %s31, 15
      %p197 = por %p195, %p196
      %p199 = scmp.ne.s32.totalorder %s184, %s198
      %p200 = scmp.eq.s32.totalorder %s31, 0
      %p201 = por %p199, %p200
      %s203 = sadd.s32 %s202, 1
      %p206 = scmp.eq.s32.totalorder %s25, 15
      %p207 = scmp.ne.s32.totalorder %s202, %s204
      %p208 = scmp.eq.s32.totalorder %s25, 0
      %p209 = por %p207, %p208
      %p210 = scmp.ne.s32.totalorder %s202, %s204
      %p211 = scmp.eq.s32.totalorder %s30, 15
      %p212 = por %p210, %p211
      %p213 = scmp.ne.s32.totalorder %s204, %s205
      %p214 = scmp.eq.s32.totalorder %s30, 0
      %p215 = por %p213, %p214
      %p216 = scmp.ne.s32.totalorder %s204, %s205
      %p217 = scmp.eq.s32.totalorder %s31, 15
      %p218 = por %p216, %p217
      %p220 = scmp.ne.s32.totalorder %s205, %s219
      %p221 = scmp.eq.s32.totalorder %s31, 0
      %p222 = por %p220, %p221
      %s224 = sadd.s32 %s223, 1
      %p227 = scmp.eq.s32.totalorder %s25, 15
      %p228 = scmp.ne.s32.totalorder %s223, %s225
      %p229 = scmp.eq.s32.totalorder %s25, 0
      %p230 = por %p228, %p229
      %p231 = scmp.ne.s32.totalorder %s223, %s225
      %p232 = scmp.eq.s32.totalorder %s30, 15
      %p233 = por %p231, %p232
      %p234 = scmp.ne.s32.totalorder %s225, %s226
      %p235 = scmp.eq.s32.totalorder %s30, 0
      %p236 = por %p234, %p235
      %p237 = scmp.ne.s32.totalorder %s225, %s226
      %p238 = scmp.eq.s32.totalorder %s31, 15
      %p239 = por %p237, %p238
      %p241 = scmp.ne.s32.totalorder %s226, %s240
      %p242 = scmp.eq.s32.totalorder %s31, 0
      %p243 = por %p241, %p242
      %s245 = sadd.s32 %s244, 1
      %p248 = scmp.eq.s32.totalorder %s25, 15
      %p249 = scmp.ne.s32.totalorder %s244, %s246
      %p250 = scmp.eq.s32.totalorder %s25, 0
      %p251 = por %p249, %p250
      %p252 = scmp.ne.s32.totalorder %s244, %s246
      %p253 = scmp.eq.s32.totalorder %s30, 15
      %p254 = por %p252, %p253
      %p255 = scmp.ne.s32.totalorder %s246, %s247
      %p256 = scmp.eq.s32.totalorder %s30, 0
      %p257 = por %p255, %p256
      %p258 = scmp.ne.s32.totalorder %s246, %s247
      %p259 = scmp.eq.s32.totalorder %s31, 15
      %p260 = por %p258, %p259
      %p262 = scmp.ne.s32.totalorder %s247, %s261
      %p263 = scmp.eq.s32.totalorder %s31, 0
      %p264 = por %p262, %p263
      %s265 = ssub.s32 %s32, %s44
      %s266 = ssub.s32 %s33, %s40
      %s267 = sor.u32 %s265, %s266
      %p268 = scmp.eq.s32.totalorder %s267, 0
      %s270 = sadd.s32 %s269, 1
      %s271 = scalar_select %p268, %s269, %s270
      %p274 = pneg %p268
      %p275 = scmp.eq.s32.totalorder %s25, 15
      %p276 = por %p274, %p275
      %p277 = scmp.ne.s32.totalorder %s269, %s272
      %p278 = scmp.eq.s32.totalorder %s25, 0
      %p279 = por %p277, %p278
      %p280 = scmp.ne.s32.totalorder %s269, %s272
      %p281 = scmp.eq.s32.totalorder %s30, 15
      %p282 = por %p280, %p281
      %p283 = scmp.ne.s32.totalorder %s272, %s273
      %p284 = scmp.eq.s32.totalorder %s30, 0
      %p285 = por %p283, %p284
      %p286 = scmp.ne.s32.totalorder %s272, %s273
      %p287 = scmp.eq.s32.totalorder %s31, 15
      %p288 = por %p286, %p287
      %p290 = scmp.ne.s32.totalorder %s273, %s289
      %p291 = scmp.eq.s32.totalorder %s31, 0
      %p292 = por %p290, %p291
      %s293 = ssub.s32 %s32, %s44
      %s294 = ssub.s32 %s33, %s40
      %s295 = sor.u32 %s293, %s294
      %p296 = scmp.eq.s32.totalorder %s295, 0
      %s298 = sadd.s32 %s297, 1
      %s299 = scalar_select %p296, %s297, %s298
      %p302 = pneg %p296
      %p303 = scmp.eq.s32.totalorder %s25, 15
      %p304 = por %p302, %p303
      %p305 = scmp.ne.s32.totalorder %s297, %s300
      %p306 = scmp.eq.s32.totalorder %s25, 0
      %p307 = por %p305, %p306
      %p308 = scmp.ne.s32.totalorder %s297, %s300
      %p309 = scmp.eq.s32.totalorder %s30, 15
      %p310 = por %p308, %p309
      %p311 = scmp.ne.s32.totalorder %s300, %s301
      %p312 = scmp.eq.s32.totalorder %s30, 0
      %p313 = por %p311, %p312
      %p314 = scmp.ne.s32.totalorder %s300, %s301
      %p315 = scmp.eq.s32.totalorder %s31, 15
      %p316 = por %p314, %p315
      %p318 = scmp.ne.s32.totalorder %s301, %s317
      %p319 = scmp.eq.s32.totalorder %s31, 0
      %p320 = por %p318, %p319
      %s321 = ssub.s32 %s32, %s44
      %p322 = scmp.eq.s32.totalorder %s321, 0
      %s324 = sadd.s32 %s323, 1
      %s325 = scalar_select %p322, %s323, %s324
      %p328 = pneg %p322
      %p329 = scmp.eq.s32.totalorder %s25, 15
      %p330 = por %p328, %p329
      %p331 = scmp.ne.s32.totalorder %s323, %s326
      %p332 = scmp.eq.s32.totalorder %s25, 0
      %p333 = por %p331, %p332
      %p334 = scmp.ne.s32.totalorder %s323, %s326
      %p335 = scmp.eq.s32.totalorder %s30, 15
      %p336 = por %p334, %p335
      %p337 = scmp.ne.s32.totalorder %s326, %s327
      %p338 = scmp.eq.s32.totalorder %s30, 0
      %p339 = por %p337, %p338
      %p340 = scmp.ne.s32.totalorder %s326, %s327
      %p341 = scmp.eq.s32.totalorder %s31, 15
      %p342 = por %p340, %p341
      %p344 = scmp.ne.s32.totalorder %s327, %s343
      %p345 = scmp.eq.s32.totalorder %s31, 0
      %p346 = por %p344, %p345
      %p347 = scmp.le.s32.totalorder 1, %s25
      %p348 = scmp.lt.s32.totalorder %s25, 17
      %p349 = pnand %p347, %p348
      %p350 = pneg %p349
      // Predicated region
      $region9: #{tpu_custom_call.1} parent=5 // pred_check
        _
      $region10: #{tpu_custom_call.1} parent=5 // pred_check_branch
        %352 = sbr.rel (%p349) target = $region12
      $region11: #{tpu_custom_call.1} parent=5 // pred_region
        %s353 = ssub.s32 %s25, 1
        // Predicated region
        $region13: #{tpu_custom_call.1} parent=11 // pred_check
          %p354 = pneg %p110
        $region14: #{tpu_custom_call.1} parent=11 // pred_check_branch
          %356 = sbr.rel (%p354) target = $region16
        $region15: #{tpu_custom_call.1} parent=11 // pred_region
          _
        $region16: #{tpu_custom_call.1} parent=11 // pred_fallthru
          _
        // Predicated region
        $region17: #{tpu_custom_call.1} parent=11 // pred_check
          %p357 = pneg %p131
        $region18: #{tpu_custom_call.1} parent=11 // pred_check_branch
          %359 = sbr.rel (%p357) target = $region20
        $region19: #{tpu_custom_call.1} parent=11 // pred_region
          _
        $region20: #{tpu_custom_call.1} parent=11 // pred_fallthru
          _
        // Predicated region
        $region21: #{tpu_custom_call.1} parent=11 // pred_check
          %p360 = pneg %p152
        $region22: #{tpu_custom_call.1} parent=11 // pred_check_branch
          %362 = sbr.rel (%p360) target = $region24
        $region23: #{tpu_custom_call.1} parent=11 // pred_region
          _
        $region24: #{tpu_custom_call.1} parent=11 // pred_fallthru
          _
        // Predicated region
        $region25: #{tpu_custom_call.1} parent=11 // pred_check
          %p363 = pneg %p173
        $region26: #{tpu_custom_call.1} parent=11 // pred_check_branch
          %365 = sbr.rel (%p363) target = $region28
        $region27: #{tpu_custom_call.1} parent=11 // pred_region
          _
        $region28: #{tpu_custom_call.1} parent=11 // pred_fallthru
          _
        // Predicated region
        $region29: #{tpu_custom_call.1} parent=11 // pred_check
          %p366 = pneg %p194
        $region30: #{tpu_custom_call.1} parent=11 // pred_check_branch
          %368 = sbr.rel (%p366) target = $region32
        $region31: #{tpu_custom_call.1} parent=11 // pred_region
          _
        $region32: #{tpu_custom_call.1} parent=11 // pred_fallthru
          _
        // Predicated region
        $region33: #{tpu_custom_call.1} parent=11 // pred_check
          %p369 = pneg %p215
        $region34: #{tpu_custom_call.1} parent=11 // pred_check_branch
          %371 = sbr.rel (%p369) target = $region36
        $region35: #{tpu_custom_call.1} parent=11 // pred_region
          _
        $region36: #{tpu_custom_call.1} parent=11 // pred_fallthru
          _
        // Predicated region
        $region37: #{tpu_custom_call.1} parent=11 // pred_check
          %p372 = pneg %p236
        $region38: #{tpu_custom_call.1} parent=11 // pred_check_branch
          %374 = sbr.rel (%p372) target = $region40
        $region39: #{tpu_custom_call.1} parent=11 // pred_region
          _
        $region40: #{tpu_custom_call.1} parent=11 // pred_fallthru
          _
        // Predicated region
        $region41: #{tpu_custom_call.1} parent=11 // pred_check
          %p375 = pneg %p257
        $region42: #{tpu_custom_call.1} parent=11 // pred_check_branch
          %377 = sbr.rel (%p375) target = $region44
        $region43: #{tpu_custom_call.1} parent=11 // pred_region
          _
        $region44: #{tpu_custom_call.1} parent=11 // pred_fallthru
          _
      $region12: #{tpu_custom_call.1} parent=5 // pred_fallthru
        _
      %p378 = scmp.lt.s32.totalorder %s25, 16
      // Predicated region
      $region45: #{tpu_custom_call.1} parent=5 // pred_check
        %p379 = pneg %p378
      $region46: #{tpu_custom_call.1} parent=5 // pred_check_branch
        %381 = sbr.rel (%p379) target = $region48
      $region47: #{tpu_custom_call.1} parent=5 // pred_region
        // Predicated region
        $region49: #{tpu_custom_call.1} parent=47 // pred_check
          %p382 = pneg %p57
        $region50: #{tpu_custom_call.1} parent=47 // pred_check_branch
          %384 = sbr.rel (%p382) target = $region52
        $region51: #{tpu_custom_call.1} parent=47 // pred_region
          %p385 = scmp.lt.s32.totalorder %s32, 1
          %s386 = scalar_select %p385, %s32, 1
          %s387 = smul.addr %s386, 2
          %s388 = smul.addr %s387, 4
          %s389 = scalar_lea.vmem %s0, %s388
        $region52: #{tpu_custom_call.1} parent=47 // pred_fallthru
          _
        // Predicated region
        $region53: #{tpu_custom_call.1} parent=47 // pred_check
          %p390 = pneg %p83
        $region54: #{tpu_custom_call.1} parent=47 // pred_check_branch
          %392 = sbr.rel (%p390) target = $region56
        $region55: #{tpu_custom_call.1} parent=47 // pred_region
          %p393 = scmp.lt.s32.totalorder %s32, 1
          %s394 = scalar_select %p393, %s32, 1
          %s395 = smul.addr %s394, 2
          %s396 = smul.addr %s395, 4
          %s397 = scalar_lea.vmem %s1, %s396
        $region56: #{tpu_custom_call.1} parent=47 // pred_fallthru
          _
      $region48: #{tpu_custom_call.1} parent=5 // pred_fallthru
        _
      %p398 = scmp.le.s32.totalorder 1, %s25
      %p399 = scmp.lt.s32.totalorder %s25, 17
      %p400 = pnand %p398, %p399
      %p401 = pneg %p400
      // Predicated region
      $region57: #{tpu_custom_call.1} parent=5 // pred_check
        _
      $region58: #{tpu_custom_call.1} parent=5 // pred_check_branch
        %403 = sbr.rel (%p400) target = $region60
      $region59: #{tpu_custom_call.1} parent=5 // pred_region
        %s404 = ssub.s32 %s25, 1
        %p405 = scmp.lt.s32.totalorder %s34, 1
        %s406 = scalar_select %p405, %s34, 1
        %s407 = smul.addr %s406, 2
        %s408 = smul.addr %s407, 4
        %s409 = scalar_lea.vmem %s0, %s408
        %p410 = pneg %p63
        %p411 = pneg %p60
        %p412 = scmp.lt.s32.totalorder %s34, 1
        %s413 = scalar_select %p412, %s34, 1
        %s414 = smul.addr %s413, 2
        %s415 = smul.addr %s414, 4
        %s416 = scalar_lea.vmem %s1, %s415
        %p417 = pneg %p89
        %p418 = pneg %p86
        %p419 = pneg %p110
        %p420 = pneg %p107
        %p421 = pneg %p131
        %p422 = pneg %p128
        %p423 = pneg %p152
        %p424 = pneg %p149
        %p425 = pneg %p173
        %p426 = pneg %p170
        %p427 = pneg %p194
        %p428 = pneg %p191
        %p429 = pneg %p215
        %p430 = pneg %p212
        %p431 = pneg %p236
        %p432 = pneg %p233
        %p433 = pneg %p257
        %p434 = pneg %p254
        %p435 = pneg %p285
        %p436 = pneg %p282
        %p437 = scmp.lt.s32.totalorder %s34, 1
        %s438 = scalar_select %p437, %s34, 1
        %p439 = scmp.lt.s32.totalorder %s35, 7
        %s440 = scalar_select %p439, %s35, 7
        %s441 = smul.addr %s438, 8
        %s442 = sadd.s32 %s440, %s441
        %s443 = smul.addr %s442, 4
        %s444 = scalar_lea.vmem %s10, %s443
        %p445 = pneg %p313
        %p446 = pneg %p310
        %s447 = sand.u32 %s300, 1
        %s448 = scalar_lea.sflag [#allocation5], %s447
        %s449 = sand.u32 %s300, 1
        %s450 = smul.addr %s449, 4
        %s451 = scalar_lea.vmem [#allocation4], %s450
        %p452 = pneg %p339
        %p453 = pneg %p336
        %s454 = sand.u32 %s326, 1
        %s455 = scalar_lea.sflag [#allocation7], %s454
        %s456 = sand.u32 %s326, 1
        %s457 = smul.addr %s456, 8
        %s458 = scalar_lea.vmem [#allocation6], %s457
        %p459 = scmp.lt.s32.totalorder %s34, 1
        %s460 = scalar_select %p459, %s34, 1
        %s461 = smul.addr %s460, 2
        %s462 = smul.addr %s461, 4
        %s463 = scalar_lea.vmem %s0, %s462
        %p464 = scmp.lt.s32.totalorder %s34, 1
        %s465 = scalar_select %p464, %s34, 1
        %s466 = smul.addr %s465, 2
        %s467 = smul.addr %s466, 4
        %s468 = scalar_lea.vmem %s1, %s467
        %p469 = scmp.lt.s32.totalorder %s34, 1
        %s470 = scalar_select %p469, %s34, 1
        %p471 = scmp.lt.s32.totalorder %s35, 7
        %s472 = scalar_select %p471, %s35, 7
        %s473 = smul.addr %s470, 8
        %s474 = sadd.s32 %s472, %s473
        %s475 = smul.addr %s474, 4
        %s476 = scalar_lea.vmem %s10, %s475
        %p477 = scmp.eq.s32.totalorder %s35, 0
        // Predicated region
        $region61: #{tpu_custom_call.1} parent=59 // pred_check
          %p478 = pneg %p477
        $region62: #{tpu_custom_call.1} parent=59 // pred_check_branch
          %480 = sbr.rel (%p478) target = $region64
        $region63: #{tpu_custom_call.1} parent=59 // pred_region
          %v481 = vld [vmem:[%s463] sm:$0x77]
          %v482 = vld [vmem:[%s468] sm:$0xff]
          %484 = vst [vmem:[#allocation1] ss:$2 sm:$0xff] %v481
          %v485 = vld.sshfl [vmem:[#allocation1] sm:$0xff pattern:$0x75316420]
          %v486 = vld.sshfl [vmem:[#allocation1 + $0x8] sm:$0xff pattern:$0x75316420]
          %489 = vst [vmem:[#allocation2] sm:$0x7] %v485
          %490 = vst [vmem:[#allocation2 + $0x8] sm:$0x7] %v486
          %492 = vst [vmem:[#allocation1] ss:$2 sm:$0xff] %v482
          %v493 = vld.sshfl [vmem:[#allocation1] sm:$0xff pattern:$0x75316420]
          %v494 = vld.sshfl [vmem:[#allocation1 + $0x8] sm:$0xff pattern:$0x75316420]
          %v495 = vrot.slane %v493, 5
          %v496 = vrot.slane %v494, 5
          %499 = vst [vmem:[#allocation2] sm:$0x78] %v495
          %500 = vst [vmem:[#allocation2 + $0x8] sm:$0x78] %v496
          %v501 = vld [vmem:[%s2] sm:$0xff]
          %v502 = vld [vmem:[%s2 + $0x8] sm:$0xff]
          %503 = vst [vmem:[#allocation1] ss:$2 sm:$0xff] %v481
          %v504 = vld.sshfl [vmem:[#allocation1] sm:$0xff pattern:$0x75316420]
          %v505 = vld.sshfl [vmem:[#allocation1 + $0x8] sm:$0xff pattern:$0x75316420]
          %vm506 = vcmask 23552
          %v508 = vsel %vm506, %v501, 0
          %v511 = vsel %vm506, %v502, 0
          %vm513 = vcmask 1042432
          %v514 = vsel %vm513, %v504, 0
          %v516 = vsel %vm513, %v505, 0
          %518 = vmatpush.msra.mxu0 0.0
          %519 = vmatpush.msra.mxu0 0.0
          %520 = vmatpush.msra.mxu0 0.0
          %521 = vmatpush.msra.mxu0 0.0
          %522 = vmatpush.msra.mxu0 0.0
          %523 = vmatpush.msra.mxu0 0.0
          %524 = vmatpush.msra.mxu0 0.0
          %525 = vmatpush.msra.mxu0 0.0
          %526 = vmatpush.msra.mxu0 0.0
          %527 = vmatpush.msra.mxu0 0.0
          %528 = vmatpush.msra.mxu0 0.0
          %529 = vmatpush.msra.mxu0 0.0
          %530 = vmatpush.msra.mxu0 0.0
          %531 = vmatpush.msra.mxu0 0.0
          %532 = vmatpush.msra.mxu0 0.0
          %533 = vmatpush.msra.mxu0 %v514
          %534 = vmatmul.f32.gmra.mxu0 %v508
          %v535 = vpop.f32.mrf.mxu0
          %v536 = vadd.f32 0.0, %v535
          %537 = vmatmul.f32.gmra.mxu0 %v511
          %v538 = vpop.f32.mrf.mxu0
          %v539 = vadd.f32 0.0, %v538
          %540 = vdwg.mxu0
          %541 = vmatpush.msra.mxu0 0.0
          %542 = vmatpush.msra.mxu0 0.0
          %543 = vmatpush.msra.mxu0 0.0
          %544 = vmatpush.msra.mxu0 0.0
          %545 = vmatpush.msra.mxu0 0.0
          %546 = vmatpush.msra.mxu0 0.0
          %547 = vmatpush.msra.mxu0 0.0
          %548 = vmatpush.msra.mxu0 0.0
          %549 = vmatpush.msra.mxu0 0.0
          %550 = vmatpush.msra.mxu0 0.0
          %551 = vmatpush.msra.mxu0 0.0
          %552 = vmatpush.msra.mxu0 0.0
          %553 = vmatpush.msra.mxu0 0.0
          %554 = vmatpush.msra.mxu0 0.0
          %555 = vmatpush.msra.mxu0 0.0
          %556 = vmatpush.msra.mxu0 %v516
          %557 = vmatmul.f32.gmra.mxu0 %v508
          %v558 = vpop.f32.mrf.mxu0
          %v559 = vadd.f32 0.0, %v558
          %560 = vmatmul.f32.gmra.mxu0 %v511
          %v561 = vpop.f32.mrf.mxu0
          %v562 = vadd.f32 0.0, %v561
          %563 = vdwg.mxu0
          %v564 = vld [vmem:[%s3] sm:$0xff]
          %v565 = vld [vmem:[%s3 + $0x8] sm:$0xff]
          %567 = vset.pattern.permute.xlu0 0
          %568 = vperm.xlu0 %567, %v564
          %v569 = vpop.permute.xlu0 %568
          %572 = vset.pattern.permute.xlu0 0
          %573 = vperm.xlu0 %572, %v565
          %v574 = vpop.permute.xlu0 %573
          %v576 = vmul.f32 %v536, %v569
          %v577 = vmul.f32 %v559, %v569
          %v578 = vmul.f32 %v539, %v574
          %v579 = vmul.f32 %v562, %v574
          %v580 = vld [vmem:[%s4] sm:$0xff]
          %v581 = vld [vmem:[%s4 + $0x8] sm:$0xff]
          %583 = vset.pattern.permute.xlu0 0
          %584 = vperm.xlu0 %583, %v580
          %v585 = vpop.permute.xlu0 %584
          %588 = vset.pattern.permute.xlu0 0
          %589 = vperm.xlu0 %588, %v581
          %v590 = vpop.permute.xlu0 %589
          %v592 = vadd.f32 %v576, %v585
          %v593 = vadd.f32 %v577, %v585
          %v594 = vadd.f32 %v578, %v590
          %v595 = vadd.f32 %v579, %v590
          %v596 = vmax.f32 %v592, 0.0
          %v597 = vmax.f32 %v593, 0.0
          %v598 = vmax.f32 %v594, 0.0
          %v599 = vmax.f32 %v595, 0.0
          %v600 = vld [vmem:[%s5] sm:$0xff]
          %v601 = vld [vmem:[%s5 + $0x8] sm:$0xff]
          %v602 = vld [vmem:[%s5 + $0x10] sm:$0xff]
          %v603 = vld [vmem:[%s5 + $0x18] sm:$0xff]
          %vm604 = vcmask 130048
          %v606 = vsel %vm604, %v600, 0
          %v609 = vsel %vm604, %v601, 0
          %v612 = vsel %vm604, %v602, 0
          %v615 = vsel %vm604, %v603, 0
          %617 = vmatpush.msra.mxu0 0.0
          %618 = vmatpush.msra.mxu0 0.0
          %619 = vmatpush.msra.mxu0 0.0
          %620 = vmatpush.msra.mxu0 0.0
          %621 = vmatpush.msra.mxu0 0.0
          %622 = vmatpush.msra.mxu0 0.0
          %623 = vmatpush.msra.mxu0 0.0
          %624 = vmatpush.msra.mxu0 0.0
          %625 = vmatpush.msra.mxu0 0.0
          %626 = vmatpush.msra.mxu0 0.0
          %627 = vmatpush.msra.mxu0 0.0
          %628 = vmatpush.msra.mxu0 0.0
          %629 = vmatpush.msra.mxu0 0.0
          %630 = vmatpush.msra.mxu0 0.0
          %631 = vmatpush.msra.mxu0 %v598
          %632 = vmatpush.msra.mxu0 %v596
          %633 = vmatmul.f32.gmra.mxu0 %v606
          %v634 = vpop.f32.mrf.mxu0
          %v635 = vadd.f32 0.0, %v634
          %636 = vmatmul.f32.gmra.mxu0 %v609
          %v637 = vpop.f32.mrf.mxu0
          %v638 = vadd.f32 0.0, %v637
          %639 = vmatmul.f32.gmra.mxu0 %v612
          %v640 = vpop.f32.mrf.mxu0
          %v641 = vadd.f32 0.0, %v640
          %642 = vmatmul.f32.gmra.mxu0 %v615
          %v643 = vpop.f32.mrf.mxu0
          %v644 = vadd.f32 0.0, %v643
          %645 = vdwg.mxu0
          %646 = vmatpush.msra.mxu0 0.0
          %647 = vmatpush.msra.mxu0 0.0
          %648 = vmatpush.msra.mxu0 0.0
          %649 = vmatpush.msra.mxu0 0.0
          %650 = vmatpush.msra.mxu0 0.0
          %651 = vmatpush.msra.mxu0 0.0
          %652 = vmatpush.msra.mxu0 0.0
          %653 = vmatpush.msra.mxu0 0.0
          %654 = vmatpush.msra.mxu0 0.0
          %655 = vmatpush.msra.mxu0 0.0
          %656 = vmatpush.msra.mxu0 0.0
          %657 = vmatpush.msra.mxu0 0.0
          %658 = vmatpush.msra.mxu0 0.0
          %659 = vmatpush.msra.mxu0 0.0
          %660 = vmatpush.msra.mxu0 %v599
          %661 = vmatpush.msra.mxu0 %v597
          %662 = vmatmul.f32.gmra.mxu0 %v606
          %v663 = vpop.f32.mrf.mxu0
          %v664 = vadd.f32 0.0, %v663
          %665 = vmatmul.f32.gmra.mxu0 %v609
          %v666 = vpop.f32.mrf.mxu0
          %v667 = vadd.f32 0.0, %v666
          %668 = vmatmul.f32.gmra.mxu0 %v612
          %v669 = vpop.f32.mrf.mxu0
          %v670 = vadd.f32 0.0, %v669
          %671 = vmatmul.f32.gmra.mxu0 %v615
          %v672 = vpop.f32.mrf.mxu0
          %v673 = vadd.f32 0.0, %v672
          %674 = vdwg.mxu0
          %v675 = vld [vmem:[%s6] sm:$0xff]
          %v676 = vld [vmem:[%s6 + $0x8] sm:$0xff]
          %v677 = vld [vmem:[%s6 + $0x10] sm:$0xff]
          %v678 = vld [vmem:[%s6 + $0x18] sm:$0xff]
          %680 = vset.pattern.permute.xlu0 0
          %681 = vperm.xlu0 %680, %v675
          %v682 = vpop.permute.xlu0 %681
          %685 = vset.pattern.permute.xlu0 0
          %686 = vperm.xlu0 %685, %v676
          %v687 = vpop.permute.xlu0 %686
          %690 = vset.pattern.permute.xlu0 0
          %691 = vperm.xlu0 %690, %v677
          %v692 = vpop.permute.xlu0 %691
          %695 = vset.pattern.permute.xlu0 0
          %696 = vperm.xlu0 %695, %v678
          %v697 = vpop.permute.xlu0 %696
          %v699 = vmul.f32 %v635, %v682
          %v700 = vmul.f32 %v664, %v682
          %v701 = vmul.f32 %v638, %v687
          %v702 = vmul.f32 %v667, %v687
          %v703 = vmul.f32 %v641, %v692
          %v704 = vmul.f32 %v670, %v692
          %v705 = vmul.f32 %v644, %v697
          %v706 = vmul.f32 %v673, %v697
          %v707 = vld [vmem:[%s7] sm:$0xff]
          %v708 = vld [vmem:[%s7 + $0x8] sm:$0xff]
          %v709 = vld [vmem:[%s7 + $0x10] sm:$0xff]
          %v710 = vld [vmem:[%s7 + $0x18] sm:$0xff]
          %712 = vset.pattern.permute.xlu0 0
          %713 = vperm.xlu0 %712, %v707
          %v714 = vpop.permute.xlu0 %713
          %717 = vset.pattern.permute.xlu0 0
          %718 = vperm.xlu0 %717, %v708
          %v719 = vpop.permute.xlu0 %718
          %722 = vset.pattern.permute.xlu0 0
          %723 = vperm.xlu0 %722, %v709
          %v724 = vpop.permute.xlu0 %723
          %727 = vset.pattern.permute.xlu0 0
          %728 = vperm.xlu0 %727, %v710
          %v729 = vpop.permute.xlu0 %728
          %v731 = vadd.f32 %v699, %v714
          %v732 = vadd.f32 %v700, %v714
          %v733 = vadd.f32 %v701, %v719
          %v734 = vadd.f32 %v702, %v719
          %v735 = vadd.f32 %v703, %v724
          %v736 = vadd.f32 %v704, %v724
          %v737 = vadd.f32 %v705, %v729
          %v738 = vadd.f32 %v706, %v729
          %v739 = vmax.f32 %v731, 0.0
          %v740 = vmax.f32 %v732, 0.0
          %v741 = vmax.f32 %v733, 0.0
          %v742 = vmax.f32 %v734, 0.0
          %v743 = vmax.f32 %v735, 0.0
          %v744 = vmax.f32 %v736, 0.0
          %v745 = vmax.f32 %v737, 0.0
          %v746 = vmax.f32 %v738, 0.0
          %v747 = vld [vmem:[%s8] sm:$0xff]
          %v748 = vld [vmem:[%s8 + $0x8] sm:$0xff]
          %v749 = vld [vmem:[%s8 + $0x10] sm:$0xff]
          %v750 = vld [vmem:[%s8 + $0x18] sm:$0xff]
          %v751 = vld [vmem:[%s8 + $0x20] sm:$0xff]
          %v752 = vld [vmem:[%s8 + $0x28] sm:$0xff]
          %v753 = vld [vmem:[%s8 + $0x30] sm:$0xff]
          %v754 = vld [vmem:[%s8 + $0x38] sm:$0xff]
          %v755 = vld [vmem:[%s8 + $0x40] sm:$0xff]
          %v756 = vld [vmem:[%s8 + $0x48] sm:$0xff]
          %v757 = vld [vmem:[%s8 + $0x50] sm:$0xff]
          %v758 = vld [vmem:[%s8 + $0x58] sm:$0xff]
          %v759 = vld [vmem:[%s8 + $0x60] sm:$0xff]
          %v760 = vld [vmem:[%s8 + $0x68] sm:$0xff]
          %v761 = vld [vmem:[%s8 + $0x70] sm:$0xff]
          %v762 = vld [vmem:[%s8 + $0x78] sm:$0xff]
          %v763 = vld [vmem:[%s9] sm:$0x1]
          %v765 = vperm.slane %v763, 0
          %767 = vxpose.xlu0.b32.start [1/16] %v739, 128
          %768 = vxpose.xlu0.b32.cont [2/16] %v741, 128
          %769 = vxpose.xlu0.b32.cont [3/16] %v743, 128
          %770 = vxpose.xlu0.b32.cont [4/16] %v745, 128
          %771 = vxpose.xlu0.b32.cont [5/16] 0.0, 128
          %772 = vxpose.xlu0.b32.cont [6/16] 0.0, 128
          %773 = vxpose.xlu0.b32.cont [7/16] 0.0, 128
          %774 = vxpose.xlu0.b32.cont [8/16] 0.0, 128
          %775 = vxpose.xlu0.b32.cont [9/16] 0.0, 128
          %776 = vxpose.xlu0.b32.cont [10/16] 0.0, 128
          %777 = vxpose.xlu0.b32.cont [11/16] 0.0, 128
          %778 = vxpose.xlu0.b32.cont [12/16] 0.0, 128
          %779 = vxpose.xlu0.b32.cont [13/16] 0.0, 128
          %780 = vxpose.xlu0.b32.cont [14/16] 0.0, 128
          %781 = vxpose.xlu0.b32.cont [15/16] 0.0, 128
          %782 = vxpose.xlu0.b32.end [16/16] 0.0, 128
          %v783 = vpop.trf.xlu0
          %v784 = vpop.trf.xlu0
          %v785 = vpop.trf.xlu0
          %v786 = vpop.trf.xlu0
          %v787 = vpop.trf.xlu0
          %v788 = vpop.trf.xlu0
          %v789 = vpop.trf.xlu0
          %v790 = vpop.trf.xlu0
          %v791 = vpop.trf.xlu0
          %v792 = vpop.trf.xlu0
          %v793 = vpop.trf.xlu0
          %v794 = vpop.trf.xlu0
          %v795 = vpop.trf.xlu0
          %v796 = vpop.trf.xlu0
          %v797 = vpop.trf.xlu0
          %v798 = vpop.trf.xlu0
          %799 = vxpose.xlu0.b32.start [1/16] %v740, 128
          %800 = vxpose.xlu0.b32.cont [2/16] %v742, 128
          %801 = vxpose.xlu0.b32.cont [3/16] %v744, 128
          %802 = vxpose.xlu0.b32.cont [4/16] %v746, 128
          %803 = vxpose.xlu0.b32.cont [5/16] 0.0, 128
          %804 = vxpose.xlu0.b32.cont [6/16] 0.0, 128
          %805 = vxpose.xlu0.b32.cont [7/16] 0.0, 128
          %806 = vxpose.xlu0.b32.cont [8/16] 0.0, 128
          %807 = vxpose.xlu0.b32.cont [9/16] 0.0, 128
          %808 = vxpose.xlu0.b32.cont [10/16] 0.0, 128
          %809 = vxpose.xlu0.b32.cont [11/16] 0.0, 128
          %810 = vxpose.xlu0.b32.cont [12/16] 0.0, 128
          %811 = vxpose.xlu0.b32.cont [13/16] 0.0, 128
          %812 = vxpose.xlu0.b32.cont [14/16] 0.0, 128
          %813 = vxpose.xlu0.b32.cont [15/16] 0.0, 128
          %814 = vxpose.xlu0.b32.end [16/16] 0.0, 128
          %v815 = vpop.trf.xlu0
          %v816 = vpop.trf.xlu0
          %v817 = vpop.trf.xlu0
          %v818 = vpop.trf.xlu0
          %v819 = vpop.trf.xlu0
          %v820 = vpop.trf.xlu0
          %v821 = vpop.trf.xlu0
          %v822 = vpop.trf.xlu0
          %v823 = vpop.trf.xlu0
          %v824 = vpop.trf.xlu0
          %v825 = vpop.trf.xlu0
          %v826 = vpop.trf.xlu0
          %v827 = vpop.trf.xlu0
          %v828 = vpop.trf.xlu0
          %v829 = vpop.trf.xlu0
          %v830 = vpop.trf.xlu0
          %vm831 = vcmask 261120
          %v833 = vsel %vm831, %v783, 0
          %v836 = vsel %vm831, %v784, 0
          %v839 = vsel %vm831, %v785, 0
          %v842 = vsel %vm831, %v786, 0
          %v845 = vsel %vm831, %v787, 0
          %v848 = vsel %vm831, %v788, 0
          %v851 = vsel %vm831, %v789, 0
          %v854 = vsel %vm831, %v790, 0
          %v857 = vsel %vm831, %v791, 0
          %v860 = vsel %vm831, %v792, 0
          %v863 = vsel %vm831, %v793, 0
          %v866 = vsel %vm831, %v794, 0
          %v869 = vsel %vm831, %v795, 0
          %v872 = vsel %vm831, %v796, 0
          %v875 = vsel %vm831, %v797, 0
          %v878 = vsel %vm831, %v798, 0
          %v881 = vsel %vm831, %v815, 0
          %v884 = vsel %vm831, %v816, 0
          %v887 = vsel %vm831, %v817, 0
          %v890 = vsel %vm831, %v818, 0
          %v893 = vsel %vm831, %v819, 0
          %v896 = vsel %vm831, %v820, 0
          %v899 = vsel %vm831, %v821, 0
          %v902 = vsel %vm831, %v822, 0
          %v905 = vsel %vm831, %v823, 0
          %v908 = vsel %vm831, %v824, 0
          %v911 = vsel %vm831, %v825, 0
          %v914 = vsel %vm831, %v826, 0
          %v917 = vsel %vm831, %v827, 0
          %v920 = vsel %vm831, %v828, 0
          %v923 = vsel %vm831, %v829, 0
          %v926 = vsel %vm831, %v830, 0
          %v929 = vsel %vm831, %v747, 0
          %v932 = vsel %vm831, %v748, 0
          %v935 = vsel %vm831, %v749, 0
          %v938 = vsel %vm831, %v750, 0
          %v941 = vsel %vm831, %v751, 0
          %v944 = vsel %vm831, %v752, 0
          %v947 = vsel %vm831, %v753, 0
          %v950 = vsel %vm831, %v754, 0
          %v953 = vsel %vm831, %v755, 0
          %v956 = vsel %vm831, %v756, 0
          %v959 = vsel %vm831, %v757, 0
          %v962 = vsel %vm831, %v758, 0
          %v965 = vsel %vm831, %v759, 0
          %v968 = vsel %vm831, %v760, 0
          %v971 = vsel %vm831, %v761, 0
          %v974 = vsel %vm831, %v762, 0
          %976 = vmatpush.xpose.msra.mxu0 %v974
          %977 = vmatpush.xpose.msra.mxu0 %v971
          %978 = vmatpush.xpose.msra.mxu0 %v968
          %979 = vmatpush.xpose.msra.mxu0 %v965
          %980 = vmatpush.xpose.msra.mxu0 %v962
          %981 = vmatpush.xpose.msra.mxu0 %v959
          %982 = vmatpush.xpose.msra.mxu0 %v956
          %983 = vmatpush.xpose.msra.mxu0 %v953
          %984 = vmatpush.xpose.msra.mxu0 %v950
          %985 = vmatpush.xpose.msra.mxu0 %v947
          %986 = vmatpush.xpose.msra.mxu0 %v944
          %987 = vmatpush.xpose.msra.mxu0 %v941
          %988 = vmatpush.xpose.msra.mxu0 %v938
          %989 = vmatpush.xpose.msra.mxu0 %v935
          %990 = vmatpush.xpose.msra.mxu0 %v932
          %991 = vmatpush.xpose.msra.mxu0 %v929
          %992 = vmatmul.f32.gmra.mxu0 %v833
          %v993 = vpop.f32.mrf.mxu0
          %v994 = vadd.f32 %v765, %v993
          %995 = vmatmul.f32.gmra.mxu0 %v836
          %v996 = vpop.f32.mrf.mxu0
          %v997 = vadd.f32 %v765, %v996
          %998 = vmatmul.f32.gmra.mxu0 %v839
          %v999 = vpop.f32.mrf.mxu0
          %v1000 = vadd.f32 %v765, %v999
          %1001 = vmatmul.f32.gmra.mxu0 %v842
          %v1002 = vpop.f32.mrf.mxu0
          %v1003 = vadd.f32 %v765, %v1002
          %1004 = vmatmul.f32.gmra.mxu0 %v845
          %v1005 = vpop.f32.mrf.mxu0
          %v1006 = vadd.f32 %v765, %v1005
          %1007 = vmatmul.f32.gmra.mxu0 %v848
          %v1008 = vpop.f32.mrf.mxu0
          %v1009 = vadd.f32 %v765, %v1008
          %1010 = vmatmul.f32.gmra.mxu0 %v851
          %v1011 = vpop.f32.mrf.mxu0
          %v1012 = vadd.f32 %v765, %v1011
          %1013 = vmatmul.f32.gmra.mxu0 %v854
          %v1014 = vpop.f32.mrf.mxu0
          %v1015 = vadd.f32 %v765, %v1014
          %1016 = vmatmul.f32.gmra.mxu0 %v857
          %v1017 = vpop.f32.mrf.mxu0
          %v1018 = vadd.f32 %v765, %v1017
          %1019 = vmatmul.f32.gmra.mxu0 %v860
          %v1020 = vpop.f32.mrf.mxu0
          %v1021 = vadd.f32 %v765, %v1020
          %1022 = vmatmul.f32.gmra.mxu0 %v863
          %v1023 = vpop.f32.mrf.mxu0
          %v1024 = vadd.f32 %v765, %v1023
          %1025 = vmatmul.f32.gmra.mxu0 %v866
          %v1026 = vpop.f32.mrf.mxu0
          %v1027 = vadd.f32 %v765, %v1026
          %1028 = vmatmul.f32.gmra.mxu0 %v869
          %v1029 = vpop.f32.mrf.mxu0
          %v1030 = vadd.f32 %v765, %v1029
          %1031 = vmatmul.f32.gmra.mxu0 %v872
          %v1032 = vpop.f32.mrf.mxu0
          %v1033 = vadd.f32 %v765, %v1032
          %1034 = vmatmul.f32.gmra.mxu0 %v875
          %v1035 = vpop.f32.mrf.mxu0
          %v1036 = vadd.f32 %v765, %v1035
          %1037 = vmatmul.f32.gmra.mxu0 %v878
          %v1038 = vpop.f32.mrf.mxu0
          %v1039 = vadd.f32 %v765, %v1038
          %1040 = vmatmul.f32.gmra.mxu0 %v881
          %v1041 = vpop.f32.mrf.mxu0
          %v1042 = vadd.f32 %v765, %v1041
          %1043 = vmatmul.f32.gmra.mxu0 %v884
          %v1044 = vpop.f32.mrf.mxu0
          %v1045 = vadd.f32 %v765, %v1044
          %1046 = vmatmul.f32.gmra.mxu0 %v887
          %v1047 = vpop.f32.mrf.mxu0
          %v1048 = vadd.f32 %v765, %v1047
          %1049 = vmatmul.f32.gmra.mxu0 %v890
          %v1050 = vpop.f32.mrf.mxu0
          %v1051 = vadd.f32 %v765, %v1050
          %1052 = vmatmul.f32.gmra.mxu0 %v893
          %v1053 = vpop.f32.mrf.mxu0
          %v1054 = vadd.f32 %v765, %v1053
          %1055 = vmatmul.f32.gmra.mxu0 %v896
          %v1056 = vpop.f32.mrf.mxu0
          %v1057 = vadd.f32 %v765, %v1056
          %1058 = vmatmul.f32.gmra.mxu0 %v899
          %v1059 = vpop.f32.mrf.mxu0
          %v1060 = vadd.f32 %v765, %v1059
          %1061 = vmatmul.f32.gmra.mxu0 %v902
          %v1062 = vpop.f32.mrf.mxu0
          %v1063 = vadd.f32 %v765, %v1062
          %1064 = vmatmul.f32.gmra.mxu0 %v905
          %v1065 = vpop.f32.mrf.mxu0
          %v1066 = vadd.f32 %v765, %v1065
          %1067 = vmatmul.f32.gmra.mxu0 %v908
          %v1068 = vpop.f32.mrf.mxu0
          %v1069 = vadd.f32 %v765, %v1068
          %1070 = vmatmul.f32.gmra.mxu0 %v911
          %v1071 = vpop.f32.mrf.mxu0
          %v1072 = vadd.f32 %v765, %v1071
          %1073 = vmatmul.f32.gmra.mxu0 %v914
          %v1074 = vpop.f32.mrf.mxu0
          %v1075 = vadd.f32 %v765, %v1074
          %1076 = vmatmul.f32.gmra.mxu0 %v917
          %v1077 = vpop.f32.mrf.mxu0
          %v1078 = vadd.f32 %v765, %v1077
          %1079 = vmatmul.f32.gmra.mxu0 %v920
          %v1080 = vpop.f32.mrf.mxu0
          %v1081 = vadd.f32 %v765, %v1080
          %1082 = vmatmul.f32.gmra.mxu0 %v923
          %v1083 = vpop.f32.mrf.mxu0
          %v1084 = vadd.f32 %v765, %v1083
          %1085 = vmatmul.f32.gmra.mxu0 %v926
          %v1086 = vpop.f32.mrf.mxu0
          %v1087 = vadd.f32 %v765, %v1086
          %1088 = vdwg.mxu0
          %v1089 = vxor.u32 %v994, 2147483648
          %v1090 = vxor.u32 %v997, 2147483648
          %v1091 = vxor.u32 %v1000, 2147483648
          %v1092 = vxor.u32 %v1003, 2147483648
          %v1093 = vxor.u32 %v1006, 2147483648
          %v1094 = vxor.u32 %v1009, 2147483648
          %v1095 = vxor.u32 %v1012, 2147483648
          %v1096 = vxor.u32 %v1015, 2147483648
          %v1097 = vxor.u32 %v1018, 2147483648
          %v1098 = vxor.u32 %v1021, 2147483648
          %v1099 = vxor.u32 %v1024, 2147483648
          %v1100 = vxor.u32 %v1027, 2147483648
          %v1101 = vxor.u32 %v1030, 2147483648
          %v1102 = vxor.u32 %v1033, 2147483648
          %v1103 = vxor.u32 %v1036, 2147483648
          %v1104 = vxor.u32 %v1039, 2147483648
          %v1105 = vxor.u32 %v1042, 2147483648
          %v1106 = vxor.u32 %v1045, 2147483648
          %v1107 = vxor.u32 %v1048, 2147483648
          %v1108 = vxor.u32 %v1051, 2147483648
          %v1109 = vxor.u32 %v1054, 2147483648
          %v1110 = vxor.u32 %v1057, 2147483648
          %v1111 = vxor.u32 %v1060, 2147483648
          %v1112 = vxor.u32 %v1063, 2147483648
          %v1113 = vxor.u32 %v1066, 2147483648
          %v1114 = vxor.u32 %v1069, 2147483648
          %v1115 = vxor.u32 %v1072, 2147483648
          %v1116 = vxor.u32 %v1075, 2147483648
          %v1117 = vxor.u32 %v1078, 2147483648
          %v1118 = vxor.u32 %v1081, 2147483648
          %v1119 = vxor.u32 %v1084, 2147483648
          %v1120 = vxor.u32 %v1087, 2147483648
          %v1121 = vmul.f32 %v1089, 1.442695
          %v1122 = vpow.pop %v1121
          %v1123 = vmul.f32 %v1090, 1.442695
          %v1124 = vpow.pop %v1123
          %v1125 = vmul.f32 %v1091, 1.442695
          %v1126 = vpow.pop %v1125
          %v1127 = vmul.f32 %v1092, 1.442695
          %v1128 = vpow.pop %v1127
          %v1129 = vmul.f32 %v1093, 1.442695
          %v1130 = vpow.pop %v1129
          %v1131 = vmul.f32 %v1094, 1.442695
          %v1132 = vpow.pop %v1131
          %v1133 = vmul.f32 %v1095, 1.442695
          %v1134 = vpow.pop %v1133
          %v1135 = vmul.f32 %v1096, 1.442695
          %v1136 = vpow.pop %v1135
          %v1137 = vmul.f32 %v1097, 1.442695
          %v1138 = vpow.pop %v1137
          %v1139 = vmul.f32 %v1098, 1.442695
          %v1140 = vpow.pop %v1139
          %v1141 = vmul.f32 %v1099, 1.442695
          %v1142 = vpow.pop %v1141
          %v1143 = vmul.f32 %v1100, 1.442695
          %v1144 = vpow.pop %v1143
          %v1145 = vmul.f32 %v1101, 1.442695
          %v1146 = vpow.pop %v1145
          %v1147 = vmul.f32 %v1102, 1.442695
          %v1148 = vpow.pop %v1147
          %v1149 = vmul.f32 %v1103, 1.442695
          %v1150 = vpow.pop %v1149
          %v1151 = vmul.f32 %v1104, 1.442695
          %v1152 = vpow.pop %v1151
          %v1153 = vmul.f32 %v1105, 1.442695
          %v1154 = vpow.pop %v1153
          %v1155 = vmul.f32 %v1106, 1.442695
          %v1156 = vpow.pop %v1155
          %v1157 = vmul.f32 %v1107, 1.442695
          %v1158 = vpow.pop %v1157
          %v1159 = vmul.f32 %v1108, 1.442695
          %v1160 = vpow.pop %v1159
          %v1161 = vmul.f32 %v1109, 1.442695
          %v1162 = vpow.pop %v1161
          %v1163 = vmul.f32 %v1110, 1.442695
          %v1164 = vpow.pop %v1163
          %v1165 = vmul.f32 %v1111, 1.442695
          %v1166 = vpow.pop %v1165
          %v1167 = vmul.f32 %v1112, 1.442695
          %v1168 = vpow.pop %v1167
          %v1169 = vmul.f32 %v1113, 1.442695
          %v1170 = vpow.pop %v1169
          %v1171 = vmul.f32 %v1114, 1.442695
          %v1172 = vpow.pop %v1171
          %v1173 = vmul.f32 %v1115, 1.442695
          %v1174 = vpow.pop %v1173
          %v1175 = vmul.f32 %v1116, 1.442695
          %v1176 = vpow.pop %v1175
          %v1177 = vmul.f32 %v1117, 1.442695
          %v1178 = vpow.pop %v1177
          %v1179 = vmul.f32 %v1118, 1.442695
          %v1180 = vpow.pop %v1179
          %v1181 = vmul.f32 %v1119, 1.442695
          %v1182 = vpow.pop %v1181
          %v1183 = vmul.f32 %v1120, 1.442695
          %v1184 = vpow.pop %v1183
          %v1185 = vadd.f32 %v1122, 1.0
          %v1186 = vadd.f32 %v1124, 1.0
          %v1187 = vadd.f32 %v1126, 1.0
          %v1188 = vadd.f32 %v1128, 1.0
          %v1189 = vadd.f32 %v1130, 1.0
          %v1190 = vadd.f32 %v1132, 1.0
          %v1191 = vadd.f32 %v1134, 1.0
          %v1192 = vadd.f32 %v1136, 1.0
          %v1193 = vadd.f32 %v1138, 1.0
          %v1194 = vadd.f32 %v1140, 1.0
          %v1195 = vadd.f32 %v1142, 1.0
          %v1196 = vadd.f32 %v1144, 1.0
          %v1197 = vadd.f32 %v1146, 1.0
          %v1198 = vadd.f32 %v1148, 1.0
          %v1199 = vadd.f32 %v1150, 1.0
          %v1200 = vadd.f32 %v1152, 1.0
          %v1201 = vadd.f32 %v1154, 1.0
          %v1202 = vadd.f32 %v1156, 1.0
          %v1203 = vadd.f32 %v1158, 1.0
          %v1204 = vadd.f32 %v1160, 1.0
          %v1205 = vadd.f32 %v1162, 1.0
          %v1206 = vadd.f32 %v1164, 1.0
          %v1207 = vadd.f32 %v1166, 1.0
          %v1208 = vadd.f32 %v1168, 1.0
          %v1209 = vadd.f32 %v1170, 1.0
          %v1210 = vadd.f32 %v1172, 1.0
          %v1211 = vadd.f32 %v1174, 1.0
          %v1212 = vadd.f32 %v1176, 1.0
          %v1213 = vadd.f32 %v1178, 1.0
          %v1214 = vadd.f32 %v1180, 1.0
          %v1215 = vadd.f32 %v1182, 1.0
          %v1216 = vadd.f32 %v1184, 1.0
          %v1217 = vrcp.pop %v1185
          %v1218 = vmul.f32 %v1185, %v1217
          %v1219 = vsub.f32 1.0, %v1218
          %v1220 = vmul.f32 %v1217, %v1219
          %v1221 = vadd.f32 %v1217, %v1220
          %vm1222 = vweird.f32 %v1185
          %vm1223 = vweird.f32 %v1217
          %vm1224 = vmor %vm1222, %vm1223
          %v1225 = vsel %vm1224, %v1217, %v1221
          %v1226 = vand.u32 2147483647, %v1185
          %vm1227 = vcmp.eq.f32.partialorder %v1226, 8.507059e+37
          %v1228 = vand.u32 %v1185, 2147483648
          %v1229 = vor.u32 1.1754944e-38, %v1228
          %v1230 = vsel %vm1227, %v1229, %v1225
          %v1231 = vmul.f32 1.0, %v1230
          %v1232 = vrcp.pop %v1186
          %v1233 = vmul.f32 %v1186, %v1232
          %v1234 = vsub.f32 1.0, %v1233
          %v1235 = vmul.f32 %v1232, %v1234
          %v1236 = vadd.f32 %v1232, %v1235
          %vm1237 = vweird.f32 %v1186
          %vm1238 = vweird.f32 %v1232
          %vm1239 = vmor %vm1237, %vm1238
          %v1240 = vsel %vm1239, %v1232, %v1236
          %v1241 = vand.u32 2147483647, %v1186
          %vm1242 = vcmp.eq.f32.partialorder %v1241, 8.507059e+37
          %v1243 = vand.u32 %v1186, 2147483648
          %v1244 = vor.u32 1.1754944e-38, %v1243
          %v1245 = vsel %vm1242, %v1244, %v1240
          %v1246 = vmul.f32 1.0, %v1245
          %v1247 = vrcp.pop %v1187
          %v1248 = vmul.f32 %v1187, %v1247
          %v1249 = vsub.f32 1.0, %v1248
          %v1250 = vmul.f32 %v1247, %v1249
          %v1251 = vadd.f32 %v1247, %v1250
          %vm1252 = vweird.f32 %v1187
          %vm1253 = vweird.f32 %v1247
          %vm1254 = vmor %vm1252, %vm1253
          %v1255 = vsel %vm1254, %v1247, %v1251
          %v1256 = vand.u32 2147483647, %v1187
          %vm1257 = vcmp.eq.f32.partialorder %v1256, 8.507059e+37
          %v1258 = vand.u32 %v1187, 2147483648
          %v1259 = vor.u32 1.1754944e-38, %v1258
          %v1260 = vsel %vm1257, %v1259, %v1255
          %v1261 = vmul.f32 1.0, %v1260
          %v1262 = vrcp.pop %v1188
          %v1263 = vmul.f32 %v1188, %v1262
          %v1264 = vsub.f32 1.0, %v1263
          %v1265 = vmul.f32 %v1262, %v1264
          %v1266 = vadd.f32 %v1262, %v1265
          %vm1267 = vweird.f32 %v1188
          %vm1268 = vweird.f32 %v1262
          %vm1269 = vmor %vm1267, %vm1268
          %v1270 = vsel %vm1269, %v1262, %v1266
          %v1271 = vand.u32 2147483647, %v1188
          %vm1272 = vcmp.eq.f32.partialorder %v1271, 8.507059e+37
          %v1273 = vand.u32 %v1188, 2147483648
          %v1274 = vor.u32 1.1754944e-38, %v1273
          %v1275 = vsel %vm1272, %v1274, %v1270
          %v1276 = vmul.f32 1.0, %v1275
          %v1277 = vrcp.pop %v1189
          %v1278 = vmul.f32 %v1189, %v1277
          %v1279 = vsub.f32 1.0, %v1278
          %v1280 = vmul.f32 %v1277, %v1279
          %v1281 = vadd.f32 %v1277, %v1280
          %vm1282 = vweird.f32 %v1189
          %vm1283 = vweird.f32 %v1277
          %vm1284 = vmor %vm1282, %vm1283
          %v1285 = vsel %vm1284, %v1277, %v1281
          %v1286 = vand.u32 2147483647, %v1189
          %vm1287 = vcmp.eq.f32.partialorder %v1286, 8.507059e+37
          %v1288 = vand.u32 %v1189, 2147483648
          %v1289 = vor.u32 1.1754944e-38, %v1288
          %v1290 = vsel %vm1287, %v1289, %v1285
          %v1291 = vmul.f32 1.0, %v1290
          %v1292 = vrcp.pop %v1190
          %v1293 = vmul.f32 %v1190, %v1292
          %v1294 = vsub.f32 1.0, %v1293
          %v1295 = vmul.f32 %v1292, %v1294
          %v1296 = vadd.f32 %v1292, %v1295
          %vm1297 = vweird.f32 %v1190
          %vm1298 = vweird.f32 %v1292
          %vm1299 = vmor %vm1297, %vm1298
          %v1300 = vsel %vm1299, %v1292, %v1296
          %v1301 = vand.u32 2147483647, %v1190
          %vm1302 = vcmp.eq.f32.partialorder %v1301, 8.507059e+37
          %v1303 = vand.u32 %v1190, 2147483648
          %v1304 = vor.u32 1.1754944e-38, %v1303
          %v1305 = vsel %vm1302, %v1304, %v1300
          %v1306 = vmul.f32 1.0, %v1305
          %v1307 = vrcp.pop %v1191
          %v1308 = vmul.f32 %v1191, %v1307
          %v1309 = vsub.f32 1.0, %v1308
          %v1310 = vmul.f32 %v1307, %v1309
          %v1311 = vadd.f32 %v1307, %v1310
          %vm1312 = vweird.f32 %v1191
          %vm1313 = vweird.f32 %v1307
          %vm1314 = vmor %vm1312, %vm1313
          %v1315 = vsel %vm1314, %v1307, %v1311
          %v1316 = vand.u32 2147483647, %v1191
          %vm1317 = vcmp.eq.f32.partialorder %v1316, 8.507059e+37
          %v1318 = vand.u32 %v1191, 2147483648
          %v1319 = vor.u32 1.1754944e-38, %v1318
          %v1320 = vsel %vm1317, %v1319, %v1315
          %v1321 = vmul.f32 1.0, %v1320
          %v1322 = vrcp.pop %v1192
          %v1323 = vmul.f32 %v1192, %v1322
          %v1324 = vsub.f32 1.0, %v1323
          %v1325 = vmul.f32 %v1322, %v1324
          %v1326 = vadd.f32 %v1322, %v1325
          %vm1327 = vweird.f32 %v1192
          %vm1328 = vweird.f32 %v1322
          %vm1329 = vmor %vm1327, %vm1328
          %v1330 = vsel %vm1329, %v1322, %v1326
          %v1331 = vand.u32 2147483647, %v1192
          %vm1332 = vcmp.eq.f32.partialorder %v1331, 8.507059e+37
          %v1333 = vand.u32 %v1192, 2147483648
          %v1334 = vor.u32 1.1754944e-38, %v1333
          %v1335 = vsel %vm1332, %v1334, %v1330
          %v1336 = vmul.f32 1.0, %v1335
          %v1337 = vrcp.pop %v1193
          %v1338 = vmul.f32 %v1193, %v1337
          %v1339 = vsub.f32 1.0, %v1338
          %v1340 = vmul.f32 %v1337, %v1339
          %v1341 = vadd.f32 %v1337, %v1340
          %vm1342 = vweird.f32 %v1193
          %vm1343 = vweird.f32 %v1337
          %vm1344 = vmor %vm1342, %vm1343
          %v1345 = vsel %vm1344, %v1337, %v1341
          %v1346 = vand.u32 2147483647, %v1193
          %vm1347 = vcmp.eq.f32.partialorder %v1346, 8.507059e+37
          %v1348 = vand.u32 %v1193, 2147483648
          %v1349 = vor.u32 1.1754944e-38, %v1348
          %v1350 = vsel %vm1347, %v1349, %v1345
          %v1351 = vmul.f32 1.0, %v1350
          %v1352 = vrcp.pop %v1194
          %v1353 = vmul.f32 %v1194, %v1352
          %v1354 = vsub.f32 1.0, %v1353
          %v1355 = vmul.f32 %v1352, %v1354
          %v1356 = vadd.f32 %v1352, %v1355
          %vm1357 = vweird.f32 %v1194
          %vm1358 = vweird.f32 %v1352
          %vm1359 = vmor %vm1357, %vm1358
          %v1360 = vsel %vm1359, %v1352, %v1356
          %v1361 = vand.u32 2147483647, %v1194
          %vm1362 = vcmp.eq.f32.partialorder %v1361, 8.507059e+37
          %v1363 = vand.u32 %v1194, 2147483648
          %v1364 = vor.u32 1.1754944e-38, %v1363
          %v1365 = vsel %vm1362, %v1364, %v1360
          %v1366 = vmul.f32 1.0, %v1365
          %v1367 = vrcp.pop %v1195
          %v1368 = vmul.f32 %v1195, %v1367
          %v1369 = vsub.f32 1.0, %v1368
          %v1370 = vmul.f32 %v1367, %v1369
          %v1371 = vadd.f32 %v1367, %v1370
          %vm1372 = vweird.f32 %v1195
          %vm1373 = vweird.f32 %v1367
          %vm1374 = vmor %vm1372, %vm1373
          %v1375 = vsel %vm1374, %v1367, %v1371
          %v1376 = vand.u32 2147483647, %v1195
          %vm1377 = vcmp.eq.f32.partialorder %v1376, 8.507059e+37
          %v1378 = vand.u32 %v1195, 2147483648
          %v1379 = vor.u32 1.1754944e-38, %v1378
          %v1380 = vsel %vm1377, %v1379, %v1375
          %v1381 = vmul.f32 1.0, %v1380
          %v1382 = vrcp.pop %v1196
          %v1383 = vmul.f32 %v1196, %v1382
          %v1384 = vsub.f32 1.0, %v1383
          %v1385 = vmul.f32 %v1382, %v1384
          %v1386 = vadd.f32 %v1382, %v1385
          %vm1387 = vweird.f32 %v1196
          %vm1388 = vweird.f32 %v1382
          %vm1389 = vmor %vm1387, %vm1388
          %v1390 = vsel %vm1389, %v1382, %v1386
          %v1391 = vand.u32 2147483647, %v1196
          %vm1392 = vcmp.eq.f32.partialorder %v1391, 8.507059e+37
          %v1393 = vand.u32 %v1196, 2147483648
          %v1394 = vor.u32 1.1754944e-38, %v1393
          %v1395 = vsel %vm1392, %v1394, %v1390
          %v1396 = vmul.f32 1.0, %v1395
          %v1397 = vrcp.pop %v1197
          %v1398 = vmul.f32 %v1197, %v1397
          %v1399 = vsub.f32 1.0, %v1398
          %v1400 = vmul.f32 %v1397, %v1399
          %v1401 = vadd.f32 %v1397, %v1400
          %vm1402 = vweird.f32 %v1197
          %vm1403 = vweird.f32 %v1397
          %vm1404 = vmor %vm1402, %vm1403
          %v1405 = vsel %vm1404, %v1397, %v1401
          %v1406 = vand.u32 2147483647, %v1197
          %vm1407 = vcmp.eq.f32.partialorder %v1406, 8.507059e+37
          %v1408 = vand.u32 %v1197, 2147483648
          %v1409 = vor.u32 1.1754944e-38, %v1408
          %v1410 = vsel %vm1407, %v1409, %v1405
          %v1411 = vmul.f32 1.0, %v1410
          %v1412 = vrcp.pop %v1198
          %v1413 = vmul.f32 %v1198, %v1412
          %v1414 = vsub.f32 1.0, %v1413
          %v1415 = vmul.f32 %v1412, %v1414
          %v1416 = vadd.f32 %v1412, %v1415
          %vm1417 = vweird.f32 %v1198
          %vm1418 = vweird.f32 %v1412
          %vm1419 = vmor %vm1417, %vm1418
          %v1420 = vsel %vm1419, %v1412, %v1416
          %v1421 = vand.u32 2147483647, %v1198
          %vm1422 = vcmp.eq.f32.partialorder %v1421, 8.507059e+37
          %v1423 = vand.u32 %v1198, 2147483648
          %v1424 = vor.u32 1.1754944e-38, %v1423
          %v1425 = vsel %vm1422, %v1424, %v1420
          %v1426 = vmul.f32 1.0, %v1425
          %v1427 = vrcp.pop %v1199
          %v1428 = vmul.f32 %v1199, %v1427
          %v1429 = vsub.f32 1.0, %v1428
          %v1430 = vmul.f32 %v1427, %v1429
          %v1431 = vadd.f32 %v1427, %v1430
          %vm1432 = vweird.f32 %v1199
          %vm1433 = vweird.f32 %v1427
          %vm1434 = vmor %vm1432, %vm1433
          %v1435 = vsel %vm1434, %v1427, %v1431
          %v1436 = vand.u32 2147483647, %v1199
          %vm1437 = vcmp.eq.f32.partialorder %v1436, 8.507059e+37
          %v1438 = vand.u32 %v1199, 2147483648
          %v1439 = vor.u32 1.1754944e-38, %v1438
          %v1440 = vsel %vm1437, %v1439, %v1435
          %v1441 = vmul.f32 1.0, %v1440
          %v1442 = vrcp.pop %v1200
          %v1443 = vmul.f32 %v1200, %v1442
          %v1444 = vsub.f32 1.0, %v1443
          %v1445 = vmul.f32 %v1442, %v1444
          %v1446 = vadd.f32 %v1442, %v1445
          %vm1447 = vweird.f32 %v1200
          %vm1448 = vweird.f32 %v1442
          %vm1449 = vmor %vm1447, %vm1448
          %v1450 = vsel %vm1449, %v1442, %v1446
          %v1451 = vand.u32 2147483647, %v1200
          %vm1452 = vcmp.eq.f32.partialorder %v1451, 8.507059e+37
          %v1453 = vand.u32 %v1200, 2147483648
          %v1454 = vor.u32 1.1754944e-38, %v1453
          %v1455 = vsel %vm1452, %v1454, %v1450
          %v1456 = vmul.f32 1.0, %v1455
          %v1457 = vrcp.pop %v1201
          %v1458 = vmul.f32 %v1201, %v1457
          %v1459 = vsub.f32 1.0, %v1458
          %v1460 = vmul.f32 %v1457, %v1459
          %v1461 = vadd.f32 %v1457, %v1460
          %vm1462 = vweird.f32 %v1201
          %vm1463 = vweird.f32 %v1457
          %vm1464 = vmor %vm1462, %vm1463
          %v1465 = vsel %vm1464, %v1457, %v1461
          %v1466 = vand.u32 2147483647, %v1201
          %vm1467 = vcmp.eq.f32.partialorder %v1466, 8.507059e+37
          %v1468 = vand.u32 %v1201, 2147483648
          %v1469 = vor.u32 1.1754944e-38, %v1468
          %v1470 = vsel %vm1467, %v1469, %v1465
          %v1471 = vmul.f32 1.0, %v1470
          %v1472 = vrcp.pop %v1202
          %v1473 = vmul.f32 %v1202, %v1472
          %v1474 = vsub.f32 1.0, %v1473
          %v1475 = vmul.f32 %v1472, %v1474
          %v1476 = vadd.f32 %v1472, %v1475
          %vm1477 = vweird.f32 %v1202
          %vm1478 = vweird.f32 %v1472
          %vm1479 = vmor %vm1477, %vm1478
          %v1480 = vsel %vm1479, %v1472, %v1476
          %v1481 = vand.u32 2147483647, %v1202
          %vm1482 = vcmp.eq.f32.partialorder %v1481, 8.507059e+37
          %v1483 = vand.u32 %v1202, 2147483648
          %v1484 = vor.u32 1.1754944e-38, %v1483
          %v1485 = vsel %vm1482, %v1484, %v1480
          %v1486 = vmul.f32 1.0, %v1485
          %v1487 = vrcp.pop %v1203
          %v1488 = vmul.f32 %v1203, %v1487
          %v1489 = vsub.f32 1.0, %v1488
          %v1490 = vmul.f32 %v1487, %v1489
          %v1491 = vadd.f32 %v1487, %v1490
          %vm1492 = vweird.f32 %v1203
          %vm1493 = vweird.f32 %v1487
          %vm1494 = vmor %vm1492, %vm1493
          %v1495 = vsel %vm1494, %v1487, %v1491
          %v1496 = vand.u32 2147483647, %v1203
          %vm1497 = vcmp.eq.f32.partialorder %v1496, 8.507059e+37
          %v1498 = vand.u32 %v1203, 2147483648
          %v1499 = vor.u32 1.1754944e-38, %v1498
          %v1500 = vsel %vm1497, %v1499, %v1495
          %v1501 = vmul.f32 1.0, %v1500
          %v1502 = vrcp.pop %v1204
          %v1503 = vmul.f32 %v1204, %v1502
          %v1504 = vsub.f32 1.0, %v1503
          %v1505 = vmul.f32 %v1502, %v1504
          %v1506 = vadd.f32 %v1502, %v1505
          %vm1507 = vweird.f32 %v1204
          %vm1508 = vweird.f32 %v1502
          %vm1509 = vmor %vm1507, %vm1508
          %v1510 = vsel %vm1509, %v1502, %v1506
          %v1511 = vand.u32 2147483647, %v1204
          %vm1512 = vcmp.eq.f32.partialorder %v1511, 8.507059e+37
          %v1513 = vand.u32 %v1204, 2147483648
          %v1514 = vor.u32 1.1754944e-38, %v1513
          %v1515 = vsel %vm1512, %v1514, %v1510
          %v1516 = vmul.f32 1.0, %v1515
          %v1517 = vrcp.pop %v1205
          %v1518 = vmul.f32 %v1205, %v1517
          %v1519 = vsub.f32 1.0, %v1518
          %v1520 = vmul.f32 %v1517, %v1519
          %v1521 = vadd.f32 %v1517, %v1520
          %vm1522 = vweird.f32 %v1205
          %vm1523 = vweird.f32 %v1517
          %vm1524 = vmor %vm1522, %vm1523
          %v1525 = vsel %vm1524, %v1517, %v1521
          %v1526 = vand.u32 2147483647, %v1205
          %vm1527 = vcmp.eq.f32.partialorder %v1526, 8.507059e+37
          %v1528 = vand.u32 %v1205, 2147483648
          %v1529 = vor.u32 1.1754944e-38, %v1528
          %v1530 = vsel %vm1527, %v1529, %v1525
          %v1531 = vmul.f32 1.0, %v1530
          %v1532 = vrcp.pop %v1206
          %v1533 = vmul.f32 %v1206, %v1532
          %v1534 = vsub.f32 1.0, %v1533
          %v1535 = vmul.f32 %v1532, %v1534
          %v1536 = vadd.f32 %v1532, %v1535
          %vm1537 = vweird.f32 %v1206
          %vm1538 = vweird.f32 %v1532
          %vm1539 = vmor %vm1537, %vm1538
          %v1540 = vsel %vm1539, %v1532, %v1536
          %v1541 = vand.u32 2147483647, %v1206
          %vm1542 = vcmp.eq.f32.partialorder %v1541, 8.507059e+37
          %v1543 = vand.u32 %v1206, 2147483648
          %v1544 = vor.u32 1.1754944e-38, %v1543
          %v1545 = vsel %vm1542, %v1544, %v1540
          %v1546 = vmul.f32 1.0, %v1545
          %v1547 = vrcp.pop %v1207
          %v1548 = vmul.f32 %v1207, %v1547
          %v1549 = vsub.f32 1.0, %v1548
          %v1550 = vmul.f32 %v1547, %v1549
          %v1551 = vadd.f32 %v1547, %v1550
          %vm1552 = vweird.f32 %v1207
          %vm1553 = vweird.f32 %v1547
          %vm1554 = vmor %vm1552, %vm1553
          %v1555 = vsel %vm1554, %v1547, %v1551
          %v1556 = vand.u32 2147483647, %v1207
          %vm1557 = vcmp.eq.f32.partialorder %v1556, 8.507059e+37
          %v1558 = vand.u32 %v1207, 2147483648
          %v1559 = vor.u32 1.1754944e-38, %v1558
          %v1560 = vsel %vm1557, %v1559, %v1555
          %v1561 = vmul.f32 1.0, %v1560
          %v1562 = vrcp.pop %v1208
          %v1563 = vmul.f32 %v1208, %v1562
          %v1564 = vsub.f32 1.0, %v1563
          %v1565 = vmul.f32 %v1562, %v1564
          %v1566 = vadd.f32 %v1562, %v1565
          %vm1567 = vweird.f32 %v1208
          %vm1568 = vweird.f32 %v1562
          %vm1569 = vmor %vm1567, %vm1568
          %v1570 = vsel %vm1569, %v1562, %v1566
          %v1571 = vand.u32 2147483647, %v1208
          %vm1572 = vcmp.eq.f32.partialorder %v1571, 8.507059e+37
          %v1573 = vand.u32 %v1208, 2147483648
          %v1574 = vor.u32 1.1754944e-38, %v1573
          %v1575 = vsel %vm1572, %v1574, %v1570
          %v1576 = vmul.f32 1.0, %v1575
          %v1577 = vrcp.pop %v1209
          %v1578 = vmul.f32 %v1209, %v1577
          %v1579 = vsub.f32 1.0, %v1578
          %v1580 = vmul.f32 %v1577, %v1579
          %v1581 = vadd.f32 %v1577, %v1580
          %vm1582 = vweird.f32 %v1209
          %vm1583 = vweird.f32 %v1577
          %vm1584 = vmor %vm1582, %vm1583
          %v1585 = vsel %vm1584, %v1577, %v1581
          %v1586 = vand.u32 2147483647, %v1209
          %vm1587 = vcmp.eq.f32.partialorder %v1586, 8.507059e+37
          %v1588 = vand.u32 %v1209, 2147483648
          %v1589 = vor.u32 1.1754944e-38, %v1588
          %v1590 = vsel %vm1587, %v1589, %v1585
          %v1591 = vmul.f32 1.0, %v1590
          %v1592 = vrcp.pop %v1210
          %v1593 = vmul.f32 %v1210, %v1592
          %v1594 = vsub.f32 1.0, %v1593
          %v1595 = vmul.f32 %v1592, %v1594
          %v1596 = vadd.f32 %v1592, %v1595
          %vm1597 = vweird.f32 %v1210
          %vm1598 = vweird.f32 %v1592
          %vm1599 = vmor %vm1597, %vm1598
          %v1600 = vsel %vm1599, %v1592, %v1596
          %v1601 = vand.u32 2147483647, %v1210
          %vm1602 = vcmp.eq.f32.partialorder %v1601, 8.507059e+37
          %v1603 = vand.u32 %v1210, 2147483648
          %v1604 = vor.u32 1.1754944e-38, %v1603
          %v1605 = vsel %vm1602, %v1604, %v1600
          %v1606 = vmul.f32 1.0, %v1605
          %v1607 = vrcp.pop %v1211
          %v1608 = vmul.f32 %v1211, %v1607
          %v1609 = vsub.f32 1.0, %v1608
          %v1610 = vmul.f32 %v1607, %v1609
          %v1611 = vadd.f32 %v1607, %v1610
          %vm1612 = vweird.f32 %v1211
          %vm1613 = vweird.f32 %v1607
          %vm1614 = vmor %vm1612, %vm1613
          %v1615 = vsel %vm1614, %v1607, %v1611
          %v1616 = vand.u32 2147483647, %v1211
          %vm1617 = vcmp.eq.f32.partialorder %v1616, 8.507059e+37
          %v1618 = vand.u32 %v1211, 2147483648
          %v1619 = vor.u32 1.1754944e-38, %v1618
          %v1620 = vsel %vm1617, %v1619, %v1615
          %v1621 = vmul.f32 1.0, %v1620
          %v1622 = vrcp.pop %v1212
          %v1623 = vmul.f32 %v1212, %v1622
          %v1624 = vsub.f32 1.0, %v1623
          %v1625 = vmul.f32 %v1622, %v1624
          %v1626 = vadd.f32 %v1622, %v1625
          %vm1627 = vweird.f32 %v1212
          %vm1628 = vweird.f32 %v1622
          %vm1629 = vmor %vm1627, %vm1628
          %v1630 = vsel %vm1629, %v1622, %v1626
          %v1631 = vand.u32 2147483647, %v1212
          %vm1632 = vcmp.eq.f32.partialorder %v1631, 8.507059e+37
          %v1633 = vand.u32 %v1212, 2147483648
          %v1634 = vor.u32 1.1754944e-38, %v1633
          %v1635 = vsel %vm1632, %v1634, %v1630
          %v1636 = vmul.f32 1.0, %v1635
          %v1637 = vrcp.pop %v1213
          %v1638 = vmul.f32 %v1213, %v1637
          %v1639 = vsub.f32 1.0, %v1638
          %v1640 = vmul.f32 %v1637, %v1639
          %v1641 = vadd.f32 %v1637, %v1640
          %vm1642 = vweird.f32 %v1213
          %vm1643 = vweird.f32 %v1637
          %vm1644 = vmor %vm1642, %vm1643
          %v1645 = vsel %vm1644, %v1637, %v1641
          %v1646 = vand.u32 2147483647, %v1213
          %vm1647 = vcmp.eq.f32.partialorder %v1646, 8.507059e+37
          %v1648 = vand.u32 %v1213, 2147483648
          %v1649 = vor.u32 1.1754944e-38, %v1648
          %v1650 = vsel %vm1647, %v1649, %v1645
          %v1651 = vmul.f32 1.0, %v1650
          %v1652 = vrcp.pop %v1214
          %v1653 = vmul.f32 %v1214, %v1652
          %v1654 = vsub.f32 1.0, %v1653
          %v1655 = vmul.f32 %v1652, %v1654
          %v1656 = vadd.f32 %v1652, %v1655
          %vm1657 = vweird.f32 %v1214
          %vm1658 = vweird.f32 %v1652
          %vm1659 = vmor %vm1657, %vm1658
          %v1660 = vsel %vm1659, %v1652, %v1656
          %v1661 = vand.u32 2147483647, %v1214
          %vm1662 = vcmp.eq.f32.partialorder %v1661, 8.507059e+37
          %v1663 = vand.u32 %v1214, 2147483648
          %v1664 = vor.u32 1.1754944e-38, %v1663
          %v1665 = vsel %vm1662, %v1664, %v1660
          %v1666 = vmul.f32 1.0, %v1665
          %v1667 = vrcp.pop %v1215
          %v1668 = vmul.f32 %v1215, %v1667
          %v1669 = vsub.f32 1.0, %v1668
          %v1670 = vmul.f32 %v1667, %v1669
          %v1671 = vadd.f32 %v1667, %v1670
          %vm1672 = vweird.f32 %v1215
          %vm1673 = vweird.f32 %v1667
          %vm1674 = vmor %vm1672, %vm1673
          %v1675 = vsel %vm1674, %v1667, %v1671
          %v1676 = vand.u32 2147483647, %v1215
          %vm1677 = vcmp.eq.f32.partialorder %v1676, 8.507059e+37
          %v1678 = vand.u32 %v1215, 2147483648
          %v1679 = vor.u32 1.1754944e-38, %v1678
          %v1680 = vsel %vm1677, %v1679, %v1675
          %v1681 = vmul.f32 1.0, %v1680
          %v1682 = vrcp.pop %v1216
          %v1683 = vmul.f32 %v1216, %v1682
          %v1684 = vsub.f32 1.0, %v1683
          %v1685 = vmul.f32 %v1682, %v1684
          %v1686 = vadd.f32 %v1682, %v1685
          %vm1687 = vweird.f32 %v1216
          %vm1688 = vweird.f32 %v1682
          %vm1689 = vmor %vm1687, %vm1688
          %v1690 = vsel %vm1689, %v1682, %v1686
          %v1691 = vand.u32 2147483647, %v1216
          %vm1692 = vcmp.eq.f32.partialorder %v1691, 8.507059e+37
          %v1693 = vand.u32 %v1216, 2147483648
          %v1694 = vor.u32 1.1754944e-38, %v1693
          %v1695 = vsel %vm1692, %v1694, %v1690
          %v1696 = vmul.f32 1.0, %v1695
          %1697 = vst [vmem:[#allocation3] sm:$0xff] %v1231
          %1698 = vst [vmem:[#allocation3 + $0x8] sm:$0xff] %v1246
          %1699 = vst [vmem:[#allocation3 + $0x10] sm:$0xff] %v1261
          %1700 = vst [vmem:[#allocation3 + $0x18] sm:$0xff] %v1276
          %1701 = vst [vmem:[#allocation3 + $0x20] sm:$0xff] %v1291
          %1702 = vst [vmem:[#allocation3 + $0x28] sm:$0xff] %v1306
          %1703 = vst [vmem:[#allocation3 + $0x30] sm:$0xff] %v1321
          %1704 = vst [vmem:[#allocation3 + $0x38] sm:$0xff] %v1336
          %1705 = vst [vmem:[#allocation3 + $0x40] sm:$0xff] %v1351
          %1706 = vst [vmem:[#allocation3 + $0x48] sm:$0xff] %v1366
          %1707 = vst [vmem:[#allocation3 + $0x50] sm:$0xff] %v1381
          %1708 = vst [vmem:[#allocation3 + $0x58] sm:$0xff] %v1396
          %1709 = vst [vmem:[#allocation3 + $0x60] sm:$0xff] %v1411
          %1710 = vst [vmem:[#allocation3 + $0x68] sm:$0xff] %v1426
          %1711 = vst [vmem:[#allocation3 + $0x70] sm:$0xff] %v1441
          %1712 = vst [vmem:[#allocation3 + $0x78] sm:$0xff] %v1456
          %1713 = vst [vmem:[#allocation3 + $0x80] sm:$0xff] %v1471
          %1714 = vst [vmem:[#allocation3 + $0x88] sm:$0xff] %v1486
          %1715 = vst [vmem:[#allocation3 + $0x90] sm:$0xff] %v1501
          %1716 = vst [vmem:[#allocation3 + $0x98] sm:$0xff] %v1516
          %1717 = vst [vmem:[#allocation3 + $0xa0] sm:$0xff] %v1531
          %1718 = vst [vmem:[#allocation3 + $0xa8] sm:$0xff] %v1546
          %1719 = vst [vmem:[#allocation3 + $0xb0] sm:$0xff] %v1561
          %1720 = vst [vmem:[#allocation3 + $0xb8] sm:$0xff] %v1576
          %1721 = vst [vmem:[#allocation3 + $0xc0] sm:$0xff] %v1591
          %1722 = vst [vmem:[#allocation3 + $0xc8] sm:$0xff] %v1606
          %1723 = vst [vmem:[#allocation3 + $0xd0] sm:$0xff] %v1621
          %1724 = vst [vmem:[#allocation3 + $0xd8] sm:$0xff] %v1636
          %1725 = vst [vmem:[#allocation3 + $0xe0] sm:$0xff] %v1651
          %1726 = vst [vmem:[#allocation3 + $0xe8] sm:$0xff] %v1666
          %1727 = vst [vmem:[#allocation3 + $0xf0] sm:$0xff] %v1681
          %1728 = vst [vmem:[#allocation3 + $0xf8] sm:$0xff] %v1696
        $region64: #{tpu_custom_call.1} parent=59 // pred_fallthru
          _
        %v1729 = vld [vmem:[#allocation3] sm:$0xff]
        %v1730 = vld [vmem:[#allocation3 + $0x8] sm:$0xff]
        %v1731 = vld [vmem:[#allocation3 + $0x10] sm:$0xff]
        %v1732 = vld [vmem:[#allocation3 + $0x18] sm:$0xff]
        %v1733 = vld [vmem:[#allocation3 + $0x20] sm:$0xff]
        %v1734 = vld [vmem:[#allocation3 + $0x28] sm:$0xff]
        %v1735 = vld [vmem:[#allocation3 + $0x30] sm:$0xff]
        %v1736 = vld [vmem:[#allocation3 + $0x38] sm:$0xff]
        %v1737 = vld [vmem:[#allocation3 + $0x40] sm:$0xff]
        %v1738 = vld [vmem:[#allocation3 + $0x48] sm:$0xff]
        %v1739 = vld [vmem:[#allocation3 + $0x50] sm:$0xff]
        %v1740 = vld [vmem:[#allocation3 + $0x58] sm:$0xff]
        %v1741 = vld [vmem:[#allocation3 + $0x60] sm:$0xff]
        %v1742 = vld [vmem:[#allocation3 + $0x68] sm:$0xff]
        %v1743 = vld [vmem:[#allocation3 + $0x70] sm:$0xff]
        %v1744 = vld [vmem:[#allocation3 + $0x78] sm:$0xff]
        %v1745 = vld [vmem:[#allocation3 + $0x80] sm:$0xff]
        %v1746 = vld [vmem:[#allocation3 + $0x88] sm:$0xff]
        %v1747 = vld [vmem:[#allocation3 + $0x90] sm:$0xff]
        %v1748 = vld [vmem:[#allocation3 + $0x98] sm:$0xff]
        %v1749 = vld [vmem:[#allocation3 + $0xa0] sm:$0xff]
        %v1750 = vld [vmem:[#allocation3 + $0xa8] sm:$0xff]
        %v1751 = vld [vmem:[#allocation3 + $0xb0] sm:$0xff]
        %v1752 = vld [vmem:[#allocation3 + $0xb8] sm:$0xff]
        %v1753 = vld [vmem:[#allocation3 + $0xc0] sm:$0xff]
        %v1754 = vld [vmem:[#allocation3 + $0xc8] sm:$0xff]
        %v1755 = vld [vmem:[#allocation3 + $0xd0] sm:$0xff]
        %v1756 = vld [vmem:[#allocation3 + $0xd8] sm:$0xff]
        %v1757 = vld [vmem:[#allocation3 + $0xe0] sm:$0xff]
        %v1758 = vld [vmem:[#allocation3 + $0xe8] sm:$0xff]
        %v1759 = vld [vmem:[#allocation3 + $0xf0] sm:$0xff]
        %v1760 = vld [vmem:[#allocation3 + $0xf8] sm:$0xff]
        %v1761 = vlaneseq
        %v1762 = vshrl.u32 %v1761, 7
        %v1763 = vadd.s32 %v1762, 8
        %v1764 = vadd.s32 %v1762, 16
        %v1765 = vadd.s32 %v1762, 24
        %v1766 = vadd.s32 %v1762, 32
        %v1767 = vadd.s32 %v1762, 40
        %v1768 = vadd.s32 %v1762, 48
        %v1769 = vadd.s32 %v1762, 56
        %v1770 = vadd.s32 %v1762, 64
        %v1771 = vadd.s32 %v1762, 72
        %v1772 = vadd.s32 %v1762, 80
        %v1773 = vadd.s32 %v1762, 88
        %v1774 = vadd.s32 %v1762, 96
        %v1775 = vadd.s32 %v1762, 104
        %v1776 = vadd.s32 %v1762, 112
        %v1777 = vadd.s32 %v1762, 120
        %v1778 = vadd.s32 %v1762, 128
        %v1779 = vadd.s32 %v1762, 136
        %v1780 = vadd.s32 %v1762, 144
        %v1781 = vadd.s32 %v1762, 152
        %v1782 = vadd.s32 %v1762, 160
        %v1783 = vadd.s32 %v1762, 168
        %v1784 = vadd.s32 %v1762, 176
        %v1785 = vadd.s32 %v1762, 184
        %v1786 = vadd.s32 %v1762, 192
        %v1787 = vadd.s32 %v1762, 200
        %v1788 = vadd.s32 %v1762, 208
        %v1789 = vadd.s32 %v1762, 216
        %v1790 = vadd.s32 %v1762, 224
        %v1791 = vadd.s32 %v1762, 232
        %v1792 = vadd.s32 %v1762, 240
        %v1793 = vadd.s32 %v1762, 248
        %v1794 = vmax.f32 %v1729, %v1733
        %v1795 = vmax.f32 %v1730, %v1734
        %v1796 = vmax.f32 %v1731, %v1735
        %v1797 = vmax.f32 %v1732, %v1736
        %v1798 = vmax.f32 %v1794, %v1737
        %v1799 = vmax.f32 %v1795, %v1738
        %v1800 = vmax.f32 %v1796, %v1739
        %v1801 = vmax.f32 %v1797, %v1740
        %v1802 = vmax.f32 %v1798, %v1741
        %v1803 = vmax.f32 %v1799, %v1742
        %v1804 = vmax.f32 %v1800, %v1743
        %v1805 = vmax.f32 %v1801, %v1744
        %v1806 = vmax.f32 %v1802, %v1745
        %v1807 = vmax.f32 %v1803, %v1746
        %v1808 = vmax.f32 %v1804, %v1747
        %v1809 = vmax.f32 %v1805, %v1748
        %v1810 = vmax.f32 %v1806, %v1749
        %v1811 = vmax.f32 %v1807, %v1750
        %v1812 = vmax.f32 %v1808, %v1751
        %v1813 = vmax.f32 %v1809, %v1752
        %v1814 = vmax.f32 %v1810, %v1753
        %v1815 = vmax.f32 %v1811, %v1754
        %v1816 = vmax.f32 %v1812, %v1755
        %v1817 = vmax.f32 %v1813, %v1756
        %v1818 = vmax.f32 %v1814, %v1757
        %v1819 = vmax.f32 %v1815, %v1758
        %v1820 = vmax.f32 %v1816, %v1759
        %v1821 = vmax.f32 %v1817, %v1760
        %v1822 = vmax.f32 %v1818, %v1819
        %v1823 = vmax.f32 %v1820, %v1821
        %v1824 = vmax.f32 %v1822, %v1823
        %v1825 = vrot.slane %v1824, 4
        %v1826 = vmax.f32 %v1824, %v1825
        %v1827 = vrot.slane %v1826, 2
        %v1828 = vmax.f32 %v1826, %v1827
        %v1829 = vrot.slane %v1828, 1
        %v1830 = vmax.f32 %v1828, %v1829
        %vm1831 = vcmp.eq.f32.partialorder %v1729, %v1830
        %vm1832 = vcmp.eq.f32.partialorder %v1730, %v1830
        %vm1833 = vcmp.eq.f32.partialorder %v1731, %v1830
        %vm1834 = vcmp.eq.f32.partialorder %v1732, %v1830
        %vm1835 = vcmp.eq.f32.partialorder %v1733, %v1830
        %vm1836 = vcmp.eq.f32.partialorder %v1734, %v1830
        %vm1837 = vcmp.eq.f32.partialorder %v1735, %v1830
        %vm1838 = vcmp.eq.f32.partialorder %v1736, %v1830
        %vm1839 = vcmp.eq.f32.partialorder %v1737, %v1830
        %vm1840 = vcmp.eq.f32.partialorder %v1738, %v1830
        %vm1841 = vcmp.eq.f32.partialorder %v1739, %v1830
        %vm1842 = vcmp.eq.f32.partialorder %v1740, %v1830
        %vm1843 = vcmp.eq.f32.partialorder %v1741, %v1830
        %vm1844 = vcmp.eq.f32.partialorder %v1742, %v1830
        %vm1845 = vcmp.eq.f32.partialorder %v1743, %v1830
        %vm1846 = vcmp.eq.f32.partialorder %v1744, %v1830
        %vm1847 = vcmp.eq.f32.partialorder %v1745, %v1830
        %vm1848 = vcmp.eq.f32.partialorder %v1746, %v1830
        %vm1849 = vcmp.eq.f32.partialorder %v1747, %v1830
        %vm1850 = vcmp.eq.f32.partialorder %v1748, %v1830
        %vm1851 = vcmp.eq.f32.partialorder %v1749, %v1830
        %vm1852 = vcmp.eq.f32.partialorder %v1750, %v1830
        %vm1853 = vcmp.eq.f32.partialorder %v1751, %v1830
        %vm1854 = vcmp.eq.f32.partialorder %v1752, %v1830
        %vm1855 = vcmp.eq.f32.partialorder %v1753, %v1830
        %vm1856 = vcmp.eq.f32.partialorder %v1754, %v1830
        %vm1857 = vcmp.eq.f32.partialorder %v1755, %v1830
        %vm1858 = vcmp.eq.f32.partialorder %v1756, %v1830
        %vm1859 = vcmp.eq.f32.partialorder %v1757, %v1830
        %vm1860 = vcmp.eq.f32.partialorder %v1758, %v1830
        %vm1861 = vcmp.eq.f32.partialorder %v1759, %v1830
        %vm1862 = vcmp.eq.f32.partialorder %v1760, %v1830
        %v1863 = vsel %vm1831, %v1762, 256
        %v1864 = vsel %vm1832, %v1763, 256
        %v1865 = vsel %vm1833, %v1764, 256
        %v1866 = vsel %vm1834, %v1765, 256
        %v1867 = vsel %vm1835, %v1766, 256
        %v1868 = vsel %vm1836, %v1767, 256
        %v1869 = vsel %vm1837, %v1768, 256
        %v1870 = vsel %vm1838, %v1769, 256
        %v1871 = vsel %vm1839, %v1770, 256
        %v1872 = vsel %vm1840, %v1771, 256
        %v1873 = vsel %vm1841, %v1772, 256
        %v1874 = vsel %vm1842, %v1773, 256
        %v1875 = vsel %vm1843, %v1774, 256
        %v1876 = vsel %vm1844, %v1775, 256
        %v1877 = vsel %vm1845, %v1776, 256
        %v1878 = vsel %vm1846, %v1777, 256
        %v1879 = vsel %vm1847, %v1778, 256
        %v1880 = vsel %vm1848, %v1779, 256
        %v1881 = vsel %vm1849, %v1780, 256
        %v1882 = vsel %vm1850, %v1781, 256
        %v1883 = vsel %vm1851, %v1782, 256
        %v1884 = vsel %vm1852, %v1783, 256
        %v1885 = vsel %vm1853, %v1784, 256
        %v1886 = vsel %vm1854, %v1785, 256
        %v1887 = vsel %vm1855, %v1786, 256
        %v1888 = vsel %vm1856, %v1787, 256
        %v1889 = vsel %vm1857, %v1788, 256
        %v1890 = vsel %vm1858, %v1789, 256
        %v1891 = vsel %vm1859, %v1790, 256
        %v1892 = vsel %vm1860, %v1791, 256
        %v1893 = vsel %vm1861, %v1792, 256
        %v1894 = vsel %vm1862, %v1793, 256
        %vm1895 = vcmp.lt.s32.totalorder %v1863, %v1867
        %v1896 = vsel %vm1895, %v1863, %v1867
        %vm1897 = vcmp.lt.s32.totalorder %v1864, %v1868
        %v1898 = vsel %vm1897, %v1864, %v1868
        %vm1899 = vcmp.lt.s32.totalorder %v1865, %v1869
        %v1900 = vsel %vm1899, %v1865, %v1869
        %vm1901 = vcmp.lt.s32.totalorder %v1866, %v1870
        %v1902 = vsel %vm1901, %v1866, %v1870
        %vm1903 = vcmp.lt.s32.totalorder %v1896, %v1871
        %v1904 = vsel %vm1903, %v1896, %v1871
        %vm1905 = vcmp.lt.s32.totalorder %v1898, %v1872
        %v1906 = vsel %vm1905, %v1898, %v1872
        %vm1907 = vcmp.lt.s32.totalorder %v1900, %v1873
        %v1908 = vsel %vm1907, %v1900, %v1873
        %vm1909 = vcmp.lt.s32.totalorder %v1902, %v1874
        %v1910 = vsel %vm1909, %v1902, %v1874
        %vm1911 = vcmp.lt.s32.totalorder %v1904, %v1875
        %v1912 = vsel %vm1911, %v1904, %v1875
        %vm1913 = vcmp.lt.s32.totalorder %v1906, %v1876
        %v1914 = vsel %vm1913, %v1906, %v1876
        %vm1915 = vcmp.lt.s32.totalorder %v1908, %v1877
        %v1916 = vsel %vm1915, %v1908, %v1877
        %vm1917 = vcmp.lt.s32.totalorder %v1910, %v1878
        %v1918 = vsel %vm1917, %v1910, %v1878
        %vm1919 = vcmp.lt.s32.totalorder %v1912, %v1879
        %v1920 = vsel %vm1919, %v1912, %v1879
        %vm1921 = vcmp.lt.s32.totalorder %v1914, %v1880
        %v1922 = vsel %vm1921, %v1914, %v1880
        %vm1923 = vcmp.lt.s32.totalorder %v1916, %v1881
        %v1924 = vsel %vm1923, %v1916, %v1881
        %vm1925 = vcmp.lt.s32.totalorder %v1918, %v1882
        %v1926 = vsel %vm1925, %v1918, %v1882
        %vm1927 = vcmp.lt.s32.totalorder %v1920, %v1883
        %v1928 = vsel %vm1927, %v1920, %v1883
        %vm1929 = vcmp.lt.s32.totalorder %v1922, %v1884
        %v1930 = vsel %vm1929, %v1922, %v1884
        %vm1931 = vcmp.lt.s32.totalorder %v1924, %v1885
        %v1932 = vsel %vm1931, %v1924, %v1885
        %vm1933 = vcmp.lt.s32.totalorder %v1926, %v1886
        %v1934 = vsel %vm1933, %v1926, %v1886
        %vm1935 = vcmp.lt.s32.totalorder %v1928, %v1887
        %v1936 = vsel %vm1935, %v1928, %v1887
        %vm1937 = vcmp.lt.s32.totalorder %v1930, %v1888
        %v1938 = vsel %vm1937, %v1930, %v1888
        %vm1939 = vcmp.lt.s32.totalorder %v1932, %v1889
        %v1940 = vsel %vm1939, %v1932, %v1889
        %vm1941 = vcmp.lt.s32.totalorder %v1934, %v1890
        %v1942 = vsel %vm1941, %v1934, %v1890
        %vm1943 = vcmp.lt.s32.totalorder %v1936, %v1891
        %v1944 = vsel %vm1943, %v1936, %v1891
        %vm1945 = vcmp.lt.s32.totalorder %v1938, %v1892
        %v1946 = vsel %vm1945, %v1938, %v1892
        %vm1947 = vcmp.lt.s32.totalorder %v1940, %v1893
        %v1948 = vsel %vm1947, %v1940, %v1893
        %vm1949 = vcmp.lt.s32.totalorder %v1942, %v1894
        %v1950 = vsel %vm1949, %v1942, %v1894
        %vm1951 = vcmp.lt.s32.totalorder %v1944, %v1946
        %v1952 = vsel %vm1951, %v1944, %v1946
        %vm1953 = vcmp.lt.s32.totalorder %v1948, %v1950
        %v1954 = vsel %vm1953, %v1948, %v1950
        %vm1955 = vcmp.lt.s32.totalorder %v1952, %v1954
        %v1956 = vsel %vm1955, %v1952, %v1954
        %v1957 = vrot.slane %v1956, 4
        %vm1958 = vcmp.lt.s32.totalorder %v1956, %v1957
        %v1959 = vsel %vm1958, %v1956, %v1957
        %v1960 = vrot.slane %v1959, 2
        %vm1961 = vcmp.lt.s32.totalorder %v1959, %v1960
        %v1962 = vsel %vm1961, %v1959, %v1960
        %v1963 = vrot.slane %v1962, 1
        %vm1964 = vcmp.lt.s32.totalorder %v1962, %v1963
        %v1965 = vsel %vm1964, %v1962, %v1963
        %s1966 = scalar_lea.vmem %s458, %s35 [#allocation6]
        %1967 = vst [vmem:[%s1966] sm:$0x1] %v1965
        %vm1968 = vcmp.eq.s32.totalorder %v1762, %v1965
        %vm1969 = vcmp.eq.s32.totalorder %v1763, %v1965
        %vm1970 = vcmp.eq.s32.totalorder %v1764, %v1965
        %vm1971 = vcmp.eq.s32.totalorder %v1765, %v1965
        %vm1972 = vcmp.eq.s32.totalorder %v1766, %v1965
        %vm1973 = vcmp.eq.s32.totalorder %v1767, %v1965
        %vm1974 = vcmp.eq.s32.totalorder %v1768, %v1965
        %vm1975 = vcmp.eq.s32.totalorder %v1769, %v1965
        %vm1976 = vcmp.eq.s32.totalorder %v1770, %v1965
        %vm1977 = vcmp.eq.s32.totalorder %v1771, %v1965
        %vm1978 = vcmp.eq.s32.totalorder %v1772, %v1965
        %vm1979 = vcmp.eq.s32.totalorder %v1773, %v1965
        %vm1980 = vcmp.eq.s32.totalorder %v1774, %v1965
        %vm1981 = vcmp.eq.s32.totalorder %v1775, %v1965
        %vm1982 = vcmp.eq.s32.totalorder %v1776, %v1965
        %vm1983 = vcmp.eq.s32.totalorder %v1777, %v1965
        %vm1984 = vcmp.eq.s32.totalorder %v1778, %v1965
        %vm1985 = vcmp.eq.s32.totalorder %v1779, %v1965
        %vm1986 = vcmp.eq.s32.totalorder %v1780, %v1965
        %vm1987 = vcmp.eq.s32.totalorder %v1781, %v1965
        %vm1988 = vcmp.eq.s32.totalorder %v1782, %v1965
        %vm1989 = vcmp.eq.s32.totalorder %v1783, %v1965
        %vm1990 = vcmp.eq.s32.totalorder %v1784, %v1965
        %vm1991 = vcmp.eq.s32.totalorder %v1785, %v1965
        %vm1992 = vcmp.eq.s32.totalorder %v1786, %v1965
        %vm1993 = vcmp.eq.s32.totalorder %v1787, %v1965
        %vm1994 = vcmp.eq.s32.totalorder %v1788, %v1965
        %vm1995 = vcmp.eq.s32.totalorder %v1789, %v1965
        %vm1996 = vcmp.eq.s32.totalorder %v1790, %v1965
        %vm1997 = vcmp.eq.s32.totalorder %v1791, %v1965
        %vm1998 = vcmp.eq.s32.totalorder %v1792, %v1965
        %vm1999 = vcmp.eq.s32.totalorder %v1793, %v1965
        %v2000 = vsel %vm1968, 1, 0
        %v2001 = vsel %vm1969, 1, 0
        %v2002 = vsel %vm1970, 1, 0
        %v2003 = vsel %vm1971, 1, 0
        %v2004 = vsel %vm1972, 1, 0
        %v2005 = vsel %vm1973, 1, 0
        %v2006 = vsel %vm1974, 1, 0
        %v2007 = vsel %vm1975, 1, 0
        %v2008 = vsel %vm1976, 1, 0
        %v2009 = vsel %vm1977, 1, 0
        %v2010 = vsel %vm1978, 1, 0
        %v2011 = vsel %vm1979, 1, 0
        %v2012 = vsel %vm1980, 1, 0
        %v2013 = vsel %vm1981, 1, 0
        %v2014 = vsel %vm1982, 1, 0
        %v2015 = vsel %vm1983, 1, 0
        %v2016 = vsel %vm1984, 1, 0
        %v2017 = vsel %vm1985, 1, 0
        %v2018 = vsel %vm1986, 1, 0
        %v2019 = vsel %vm1987, 1, 0
        %v2020 = vsel %vm1988, 1, 0
        %v2021 = vsel %vm1989, 1, 0
        %v2022 = vsel %vm1990, 1, 0
        %v2023 = vsel %vm1991, 1, 0
        %v2024 = vsel %vm1992, 1, 0
        %v2025 = vsel %vm1993, 1, 0
        %v2026 = vsel %vm1994, 1, 0
        %v2027 = vsel %vm1995, 1, 0
        %v2028 = vsel %vm1996, 1, 0
        %v2029 = vsel %vm1997, 1, 0
        %v2030 = vsel %vm1998, 1, 0
        %v2031 = vsel %vm1999, 1, 0
        %v2032 = vcvt.s32.f32 %v2000
        %v2033 = vcvt.s32.f32 %v2001
        %v2034 = vcvt.s32.f32 %v2002
        %v2035 = vcvt.s32.f32 %v2003
        %v2036 = vcvt.s32.f32 %v2004
        %v2037 = vcvt.s32.f32 %v2005
        %v2038 = vcvt.s32.f32 %v2006
        %v2039 = vcvt.s32.f32 %v2007
        %v2040 = vcvt.s32.f32 %v2008
        %v2041 = vcvt.s32.f32 %v2009
        %v2042 = vcvt.s32.f32 %v2010
        %v2043 = vcvt.s32.f32 %v2011
        %v2044 = vcvt.s32.f32 %v2012
        %v2045 = vcvt.s32.f32 %v2013
        %v2046 = vcvt.s32.f32 %v2014
        %v2047 = vcvt.s32.f32 %v2015
        %v2048 = vcvt.s32.f32 %v2016
        %v2049 = vcvt.s32.f32 %v2017
        %v2050 = vcvt.s32.f32 %v2018
        %v2051 = vcvt.s32.f32 %v2019
        %v2052 = vcvt.s32.f32 %v2020
        %v2053 = vcvt.s32.f32 %v2021
        %v2054 = vcvt.s32.f32 %v2022
        %v2055 = vcvt.s32.f32 %v2023
        %v2056 = vcvt.s32.f32 %v2024
        %v2057 = vcvt.s32.f32 %v2025
        %v2058 = vcvt.s32.f32 %v2026
        %v2059 = vcvt.s32.f32 %v2027
        %v2060 = vcvt.s32.f32 %v2028
        %v2061 = vcvt.s32.f32 %v2029
        %v2062 = vcvt.s32.f32 %v2030
        %v2063 = vcvt.s32.f32 %v2031
        %v2064 = vld [vmem:[#allocation2] sm:$0x7f]
        %v2065 = vld [vmem:[#allocation2 + $0x8] sm:$0x7f]
        %2066 = vmatpush.msra.mxu0 %v2047
        %2067 = vmatpush.msra.mxu0 %v2046
        %2068 = vmatpush.msra.mxu0 %v2045
        %2069 = vmatpush.msra.mxu0 %v2044
        %2070 = vmatpush.msra.mxu0 %v2043
        %2071 = vmatpush.msra.mxu0 %v2042
        %2072 = vmatpush.msra.mxu0 %v2041
        %2073 = vmatpush.msra.mxu0 %v2040
        %2074 = vmatpush.msra.mxu0 %v2039
        %2075 = vmatpush.msra.mxu0 %v2038
        %2076 = vmatpush.msra.mxu0 %v2037
        %2077 = vmatpush.msra.mxu0 %v2036
        %2078 = vmatpush.msra.mxu0 %v2035
        %2079 = vmatpush.msra.mxu0 %v2034
        %2080 = vmatpush.msra.mxu0 %v2033
        %2081 = vmatpush.msra.mxu0 %v2032
        %2082 = vmatmul.f32.gmra.mxu0 %v2064
        %v2083 = vpop.f32.mrf.mxu0
        %v2084 = vadd.f32 0.0, %v2083
        %2085 = vdwg.mxu0
        %2086 = vmatpush.msra.mxu0 %v2063
        %2087 = vmatpush.msra.mxu0 %v2062
        %2088 = vmatpush.msra.mxu0 %v2061
        %2089 = vmatpush.msra.mxu0 %v2060
        %2090 = vmatpush.msra.mxu0 %v2059
        %2091 = vmatpush.msra.mxu0 %v2058
        %2092 = vmatpush.msra.mxu0 %v2057
        %2093 = vmatpush.msra.mxu0 %v2056
        %2094 = vmatpush.msra.mxu0 %v2055
        %2095 = vmatpush.msra.mxu0 %v2054
        %2096 = vmatpush.msra.mxu0 %v2053
        %2097 = vmatpush.msra.mxu0 %v2052
        %2098 = vmatpush.msra.mxu0 %v2051
        %2099 = vmatpush.msra.mxu0 %v2050
        %2100 = vmatpush.msra.mxu0 %v2049
        %2101 = vmatpush.msra.mxu0 %v2048
        %2102 = vmatmul.f32.gmra.mxu0 %v2065
        %v2103 = vpop.f32.mrf.mxu0
        %v2104 = vadd.f32 %v2084, %v2103
        %2105 = vdwg.mxu0
        %2106 = vst [vmem:[%s476] sm:$0x7] %v2104
        %2107 = vst [vmem:[%s451 - $0x3] sm:$0x78] %v2104
        %v2108 = vsel %vm1968, -1.0, %v1729
        %v2109 = vsel %vm1969, -1.0, %v1730
        %v2110 = vsel %vm1970, -1.0, %v1731
        %v2111 = vsel %vm1971, -1.0, %v1732
        %v2112 = vsel %vm1972, -1.0, %v1733
        %v2113 = vsel %vm1973, -1.0, %v1734
        %v2114 = vsel %vm1974, -1.0, %v1735
        %v2115 = vsel %vm1975, -1.0, %v1736
        %v2116 = vsel %vm1976, -1.0, %v1737
        %v2117 = vsel %vm1977, -1.0, %v1738
        %v2118 = vsel %vm1978, -1.0, %v1739
        %v2119 = vsel %vm1979, -1.0, %v1740
        %v2120 = vsel %vm1980, -1.0, %v1741
        %v2121 = vsel %vm1981, -1.0, %v1742
        %v2122 = vsel %vm1982, -1.0, %v1743
        %v2123 = vsel %vm1983, -1.0, %v1744
        %v2124 = vsel %vm1984, -1.0, %v1745
        %v2125 = vsel %vm1985, -1.0, %v1746
        %v2126 = vsel %vm1986, -1.0, %v1747
        %v2127 = vsel %vm1987, -1.0, %v1748
        %v2128 = vsel %vm1988, -1.0, %v1749
        %v2129 = vsel %vm1989, -1.0, %v1750
        %v2130 = vsel %vm1990, -1.0, %v1751
        %v2131 = vsel %vm1991, -1.0, %v1752
        %v2132 = vsel %vm1992, -1.0, %v1753
        %v2133 = vsel %vm1993, -1.0, %v1754
        %v2134 = vsel %vm1994, -1.0, %v1755
        %v2135 = vsel %vm1995, -1.0, %v1756
        %v2136 = vsel %vm1996, -1.0, %v1757
        %v2137 = vsel %vm1997, -1.0, %v1758
        %v2138 = vsel %vm1998, -1.0, %v1759
        %v2139 = vsel %vm1999, -1.0, %v1760
        %2140 = vst [vmem:[#allocation3] sm:$0xff] %v2108
        %2141 = vst [vmem:[#allocation3 + $0x8] sm:$0xff] %v2109
        %2142 = vst [vmem:[#allocation3 + $0x10] sm:$0xff] %v2110
        %2143 = vst [vmem:[#allocation3 + $0x18] sm:$0xff] %v2111
        %2144 = vst [vmem:[#allocation3 + $0x20] sm:$0xff] %v2112
        %2145 = vst [vmem:[#allocation3 + $0x28] sm:$0xff] %v2113
        %2146 = vst [vmem:[#allocation3 + $0x30] sm:$0xff] %v2114
        %2147 = vst [vmem:[#allocation3 + $0x38] sm:$0xff] %v2115
        %2148 = vst [vmem:[#allocation3 + $0x40] sm:$0xff] %v2116
        %2149 = vst [vmem:[#allocation3 + $0x48] sm:$0xff] %v2117
        %2150 = vst [vmem:[#allocation3 + $0x50] sm:$0xff] %v2118
        %2151 = vst [vmem:[#allocation3 + $0x58] sm:$0xff] %v2119
        %2152 = vst [vmem:[#allocation3 + $0x60] sm:$0xff] %v2120
        %2153 = vst [vmem:[#allocation3 + $0x68] sm:$0xff] %v2121
        %2154 = vst [vmem:[#allocation3 + $0x70] sm:$0xff] %v2122
        %2155 = vst [vmem:[#allocation3 + $0x78] sm:$0xff] %v2123
        %2156 = vst [vmem:[#allocation3 + $0x80] sm:$0xff] %v2124
        %2157 = vst [vmem:[#allocation3 + $0x88] sm:$0xff] %v2125
        %2158 = vst [vmem:[#allocation3 + $0x90] sm:$0xff] %v2126
        %2159 = vst [vmem:[#allocation3 + $0x98] sm:$0xff] %v2127
        %2160 = vst [vmem:[#allocation3 + $0xa0] sm:$0xff] %v2128
        %2161 = vst [vmem:[#allocation3 + $0xa8] sm:$0xff] %v2129
        %2162 = vst [vmem:[#allocation3 + $0xb0] sm:$0xff] %v2130
        %2163 = vst [vmem:[#allocation3 + $0xb8] sm:$0xff] %v2131
        %2164 = vst [vmem:[#allocation3 + $0xc0] sm:$0xff] %v2132
        %2165 = vst [vmem:[#allocation3 + $0xc8] sm:$0xff] %v2133
        %2166 = vst [vmem:[#allocation3 + $0xd0] sm:$0xff] %v2134
        %2167 = vst [vmem:[#allocation3 + $0xd8] sm:$0xff] %v2135
        %2168 = vst [vmem:[#allocation3 + $0xe0] sm:$0xff] %v2136
        %2169 = vst [vmem:[#allocation3 + $0xe8] sm:$0xff] %v2137
        %2170 = vst [vmem:[#allocation3 + $0xf0] sm:$0xff] %v2138
        %2171 = vst [vmem:[#allocation3 + $0xf8] sm:$0xff] %v2139
        %p2172 = scmp.lt.s32.totalorder %s34, 1
        %s2173 = scalar_select %p2172, %s34, 1
        %p2174 = scmp.lt.s32.totalorder %s35, 7
        %s2175 = scalar_select %p2174, %s35, 7
        %s2176 = smul.addr %s2173, 8
        %s2177 = sadd.s32 %s2175, %s2176
        %s2178 = smul.addr %s2177, 4
        %s2179 = scalar_lea.vmem %s10, %s2178
        %s2180 = sand.u32 %s300, 1
        %s2181 = scalar_lea.sflag [#allocation5], %s2180
        %s2182 = sand.u32 %s300, 1
        %s2183 = smul.addr %s2182, 4
        %s2184 = scalar_lea.vmem [#allocation4], %s2183
        %s2185 = sand.u32 %s326, 1
        %s2186 = scalar_lea.sflag [#allocation7], %s2185
        %s2187 = sand.u32 %s326, 1
        %s2188 = smul.addr %s2187, 8
        %s2189 = scalar_lea.vmem [#allocation6], %s2188
        // Predicated region
        $region65: #{tpu_custom_call.1} parent=59 // pred_check
          %p2190 = pneg %p282
        $region66: #{tpu_custom_call.1} parent=59 // pred_check_branch
          %2192 = sbr.rel (%p2190) target = $region68
        $region67: #{tpu_custom_call.1} parent=59 // pred_region
          _
        $region68: #{tpu_custom_call.1} parent=59 // pred_fallthru
          _
        // Predicated region
        $region69: #{tpu_custom_call.1} parent=59 // pred_check
          %p2193 = pneg %p310
        $region70: #{tpu_custom_call.1} parent=59 // pred_check_branch
          %2195 = sbr.rel (%p2193) target = $region72
        $region71: #{tpu_custom_call.1} parent=59 // pred_region
          %2197 = vsyncadd %s2181, 0
          %s2198 = smul.addr %s34, 8
          %s2199 = sadd.s32 %s35, %s2198
          %s2200 = smul.addr %s2199, 4
          %s2201 = scalar_lea.hbm %s11, %s2200
          %s2203 = sshll.u32 %s2184, 4
          %s2204 = int_to_ptr.vmem [resolvable:$true] %s2203
          %s2205 = sshll.u32 %s2201, 4
          %s2206 = int_to_ptr.hbm [resolvable:$true] %s2205
          %2208 = dma.vmem_to_hbm [thread:$0]  %s2204, 64, %s2206, %s2181
        $region72: #{tpu_custom_call.1} parent=59 // pred_fallthru
          _
        // Predicated region
        $region73: #{tpu_custom_call.1} parent=59 // pred_check
          %p2209 = pneg %p336
        $region74: #{tpu_custom_call.1} parent=59 // pred_check_branch
          %2211 = sbr.rel (%p2209) target = $region76
        $region75: #{tpu_custom_call.1} parent=59 // pred_region
          %2213 = vsyncadd %s2186, 0
          %s2214 = smul.addr %s34, 8
          %s2215 = scalar_lea.hbm %s12, %s2214
          %s2217 = sshll.u32 %s2189, 4
          %s2218 = int_to_ptr.vmem [resolvable:$true] %s2217
          %s2219 = sshll.u32 %s2215, 4
          %s2220 = int_to_ptr.hbm [resolvable:$true] %s2219
          %2222 = dma.vmem_to_hbm [thread:$0]  %s2218, 128, %s2220, %s2186
        $region76: #{tpu_custom_call.1} parent=59 // pred_fallthru
          _
      $region60: #{tpu_custom_call.1} parent=5 // pred_fallthru
        _
      %p2223 = scmp.le.s32.totalorder 2, %s25
      // Predicated region
      $region77: #{tpu_custom_call.1} parent=5 // pred_check
        %p2224 = pneg %p2223
      $region78: #{tpu_custom_call.1} parent=5 // pred_check_branch
        %2226 = sbr.rel (%p2224) target = $region80
      $region79: #{tpu_custom_call.1} parent=5 // pred_region
        %s2227 = ssub.s32 %s25, 2
        // Predicated region
        $region81: #{tpu_custom_call.1} parent=79 // pred_check
          %p2228 = pneg %p288
        $region82: #{tpu_custom_call.1} parent=79 // pred_check_branch
          %2230 = sbr.rel (%p2228) target = $region84
        $region83: #{tpu_custom_call.1} parent=79 // pred_region
          %p2231 = scmp.lt.s32.totalorder %s36, 1
          %s2232 = scalar_select %p2231, %s36, 1
          %p2233 = scmp.lt.s32.totalorder %s37, 7
          %s2234 = scalar_select %p2233, %s37, 7
          %s2235 = smul.addr %s2232, 8
          %s2236 = sadd.s32 %s2234, %s2235
          %s2237 = smul.addr %s2236, 4
          %s2238 = scalar_lea.vmem %s10, %s2237
        $region84: #{tpu_custom_call.1} parent=79 // pred_fallthru
          _
        // Predicated region
        $region85: #{tpu_custom_call.1} parent=79 // pred_check
          %p2239 = pneg %p316
        $region86: #{tpu_custom_call.1} parent=79 // pred_check_branch
          %2241 = sbr.rel (%p2239) target = $region88
        $region87: #{tpu_custom_call.1} parent=79 // pred_region
          %s2242 = sand.u32 %s301, 1
          %s2243 = scalar_lea.sflag [#allocation5], %s2242
          %s2244 = sand.u32 %s301, 1
          %s2245 = smul.addr %s2244, 4
          %s2246 = scalar_lea.vmem [#allocation4], %s2245
          %2248 = dma.done %s2243, 64
        $region88: #{tpu_custom_call.1} parent=79 // pred_fallthru
          _
        // Predicated region
        $region89: #{tpu_custom_call.1} parent=79 // pred_check
          %p2249 = pneg %p342
        $region90: #{tpu_custom_call.1} parent=79 // pred_check_branch
          %2251 = sbr.rel (%p2249) target = $region92
        $region91: #{tpu_custom_call.1} parent=79 // pred_region
          %s2252 = sand.u32 %s327, 1
          %s2253 = scalar_lea.sflag [#allocation7], %s2252
          %s2254 = sand.u32 %s327, 1
          %s2255 = smul.addr %s2254, 8
          %s2256 = scalar_lea.vmem [#allocation6], %s2255
          %2258 = dma.done %s2253, 128
        $region92: #{tpu_custom_call.1} parent=79 // pred_fallthru
          _
      $region80: #{tpu_custom_call.1} parent=5 // pred_fallthru
        _
    $region6: #{tpu_custom_call.1} parent=1 // loop_footer
      %s29 = sadd.s32 1, %s25
    $region7: #{tpu_custom_call.1} parent=1 // loop_footer_branch
      %24 = sbr.rel target = $region3
    $region8: #{tpu_custom_call.1} parent=1 // loop_exit
      _
    %2259 = vsyncpa [#allocation5], 1
    %s2260 = scalar_lea.sflag [#allocation5], 1
    %2261 = vsyncpa %s2260, 1
    %2262 = vsyncpa [#allocation7], 1
    %s2263 = scalar_lea.sflag [#allocation7], 1
    %2264 = vsyncpa %s2263, 1

</llo_original>
